<compile_context>
chip_gen: v7x
topology: tpu7x:2x2x1
jax: 0.10.0
libtpu: 0.0.40
codegen_flags: <defaults>
</compile_context>

<pallas_src>
import functools

import jax
import jax.numpy as jnp
import numpy as np
from jax import lax
from jax.experimental import pallas as pl
from jax.experimental.pallas import tpu as pltpu


# ---------------------------------------------------------------------------
# Exact GELU from basic VPU/EUP ops (erf via Abramowitz & Stegun 7.1.26).
# ---------------------------------------------------------------------------
_SQRT_HALF = 0.7071067811865476


def _erf_poly(z):
    a1, a2, a3, a4, a5 = 0.254829592, -0.284496736, 1.421413741, -1.453152027, 1.061405429
    p = 0.3275911
    az = jnp.where(z < 0, -z, z)
    t = 1.0 / (1.0 + p * az)
    poly = t * (a1 + t * (a2 + t * (a3 + t * (a4 + t * a5))))
    e = 1.0 - poly * jnp.exp(-az * az)
    return jnp.where(z < 0, -e, e)


def _gelu_exact(x):
    return 0.5 * x * (1.0 + _erf_poly(x * _SQRT_HALF))


# ---------------------------------------------------------------------------
# Fused kernel: fc1 -> depthwise 3x3 + bias + GELU -> fc2, per (batch, row-tile)
# ---------------------------------------------------------------------------
def _mlp_fused_kernel(x_ref, w1_ref, b1_ref, wdw_ref, bdw_ref, w2_ref, b2_ref,
                      o_ref, hid_ref, *, TH, W):
    """One (batch, row-tile) grid step.

    x_ref  : ((TH+2)*W, C_in)   row-halo token tile (built in the wrapper), mm dtype
    w1_ref : (C_in, HID)  mm    b1_ref : (1, HID)  f32
    wdw_ref: (9, HID)     f32   bdw_ref: (1, HID)  f32   (3x3 taps flattened, row=di*3+dj)
    w2_ref : (HID, C_out) mm    b2_ref : (1, C_out) f32
    o_ref  : (TH*W, C_out)      output tokens of this row tile
    hid_ref: ((TH+2)*W, HID) f32 VMEM scratch (fully aligned, no padded border)
    """
    HID = hid_ref.shape[-1]
    THW = TH * W
    TP2W = (TH + 2) * W
    t = pl.program_id(1)
    nt = pl.num_programs(1)

    # -- fc1: ONE MXU matmul for interior + both 1-row halos (bf16 in, f32 acc) --
    h = jnp.dot(x_ref[...], w1_ref[...], preferred_element_type=jnp.float32)
    hid_ref[...] = h + b1_ref[...]          # full, aligned store of the hidden tile

    # Conv2d zero padding along H: out-of-image halo rows must be 0, not fc1(0)=b1.
    @pl.when(t == 0)
    def _():
        hid_ref[0:W, :] = jnp.zeros((W, HID), jnp.float32)

    @pl.when(t == nt - 1)
    def _():
        hid_ref[TP2W - W:TP2W, :] = jnp.zeros((W, HID), jnp.float32)

    # -- depthwise 3x3 + bias + exact GELU: f32 on the VPU, column shifts on the XLU --
    col = lax.broadcasted_iota(jnp.int32, (THW, 1), 0) % W
    not_left = col != 0            # output column > 0   -> left neighbour in-image
    not_right = col != (W - 1)     # output column < W-1 -> right neighbour in-image

    wdw = wdw_ref[...]             # (9, HID)
    acc = jnp.zeros((THW, HID), jnp.float32)
    for di in range(3):
        # Rows of the hidden tile for this vertical tap: a contiguous token range
        # starting at di*W (aligned when W % 8 == 0) -- no padded-border slices.
        base = hid_ref[di * W: di * W + THW, :]
        # dj = 1 (center column)
        acc = acc + base * wdw[3 * di + 1: 3 * di + 2, :]
        # dj = 0 (left neighbour): shift tokens by +1, zero the wrapped column 0
        left = jnp.where(not_left, pltpu.roll(base, 1, 0), 0.0)
        acc = acc + left * wdw[3 * di: 3 * di + 1, :]
        # dj = 2 (right neighbour): shift tokens by -1 (== +THW-1), zero column W-1
        right = jnp.where(not_right, pltpu.roll(base, THW - 1, 0), 0.0)
        acc = acc + right * wdw[3 * di + 2: 3 * di + 3, :]
    acc = acc + bdw_ref[...]
    act = _gelu_exact(acc)          # exact (erf) GELU == PyTorch nn.GELU() default

    # -- fc2 straight from VMEM: the wide hidden activation never touches HBM --
    y = jnp.dot(act.astype(w2_ref.dtype), w2_ref[...],
                preferred_element_type=jnp.float32) + b2_ref[...]
    o_ref[...] = y.astype(o_ref.dtype)


# ---------------------------------------------------------------------------
# Generation-aware sizing helpers
# ---------------------------------------------------------------------------
def _vmem_capacity_bytes():
    try:
        info = pltpu.get_tpu_info()
        return int(getattr(info, "vmem_capacity_bytes", 64 << 20))
    except Exception:
        return 64 << 20          # conservative (v7x-sized) fallback


def _tile_vmem_bytes(TH, W, C_in, HID, C_out, mm_bytes, out_bytes):
    tp2w, thw = (TH + 2) * W, TH * W
    b = 2 * tp2w * C_in * mm_bytes                    # x halo tile (double-buffered)
    b += 2 * (C_in * HID + HID * C_out) * mm_bytes    # w1, w2 (worst case double-buffered)
    b += 2 * (11 * HID + C_out) * 4                   # biases + 3x3 depthwise weights
    b += 2 * thw * C_out * out_bytes                  # output tile (double-buffered)
    b += tp2w * HID * 4                               # hidden VMEM scratch
    b += 6 * thw * HID * 4                            # live f32 temporaries (acc/base/shift/act)
    return b


def _pick_block_h(H, W, C_in, HID, C_out, mm_bytes, out_bytes, budget):
    cands = [th for th in range(1, H + 1)
             if H % th == 0 and (th == H or (th * W) % 8 == 0)]
    fitting = [th for th in cands
               if _tile_vmem_bytes(th, W, C_in, HID, C_out, mm_bytes, out_bytes) <= budget]
    # Never silently fall back to the full image if it does not fit the budget.
    return max(fitting) if fitting else min(cands)


def _round_up(x, m):
    return ((x + m - 1) // m) * m


# ---------------------------------------------------------------------------
# Wrapper
# ---------------------------------------------------------------------------
@functools.partial(jax.jit, static_argnames=("H", "W", "block_h", "matmul_dtype"))
def mlp_forward(x, params, H, W, block_h=None, matmul_dtype=jnp.bfloat16):
    """x: (B, N, C_in) with N == H*W (tokens row-major over H then W)."""
    B, N, C_in = x.shape
    assert N == H * W, "token count must equal H*W"
    HID = params["w1"].shape[1]
    C_out = params["w2"].shape[1]

    LANE = 128
    HIDp = _round_up(HID, LANE)          # lane-dense hidden channels
    C_outp = _round_up(C_out, LANE)      # lane-dense (unmasked) output stores

    mm = jnp.dtype(matmul_dtype)
    out_dtype = x.dtype
    out_bytes = jnp.dtype(out_dtype).itemsize

    cap = _vmem_capacity_bytes()
    budget = int(cap * 0.75)             # ~96 MiB on v5e/v6e, ~48 MiB on v7x

    if block_h is None:
        block_h = _pick_block_h(H, W, C_in, HIDp, C_outp, mm.itemsize, out_bytes, budget)
    TH = block_h
    if H % TH != 0 or (TH != H and (TH * W) % 8 != 0):
        raise ValueError(f"invalid block_h={TH} for H={H}, W={W}")
    n_tiles = H // TH
    TP2W = (TH + 2) * W

    # ---- parameter prep: zero-pad to lane-dense widths (numerically exact),
    #      cast matmul weights to the MXU dtype ----
    def pad2(a, r, c):
        return jnp.pad(a, ((0, r - a.shape[0]), (0, c - a.shape[1])))

    w1 = pad2(params["w1"], C_in, HIDp).astype(mm)
    b1 = pad2(params["b1"], 1, HIDp).astype(jnp.float32)
    wdw = pad2(params["wdw"].reshape(9, HID), 9, HIDp).astype(jnp.float32)
    bdw = pad2(params["bdw"], 1, HIDp).astype(jnp.float32)
    w2 = pad2(params["w2"], HIDp, C_outp).astype(mm)
    b2 = pad2(params["b2"], 1, C_outp).astype(jnp.float32)

    # ---- x: row-halo tiles (B, n_tiles, (TH+2)*W, C_in).  Tile t holds image rows
    #      [t*TH-1, t*TH+TH] (zero rows outside the image), so fc1 for interior and
    #      both halos is a single contiguous matmul in the kernel. ----
    xi = x.astype(mm).reshape(B, H, W, C_in)
    xi = jnp.pad(xi, ((0, 0), (1, 1), (0, 0), (0, 0)))
    rows = jnp.arange(n_tiles)[:, None] * TH + jnp.arange(TH + 2)[None, :]
    x_tiles = xi[:, rows].reshape(B, n_tiles, TP2W, C_in)

    kernel = functools.partial(_mlp_fused_kernel, TH=TH, W=W)

    flops = 2 * B * N * HIDp * (C_in + C_outp + 9)
    bytes_accessed = (B * N * (C_in * mm.itemsize + C_outp * out_bytes)
                      + (C_in * HIDp + HIDp * C_outp) * mm.itemsize
                      + (11 * HIDp + C_outp) * 4)

    y = pl.pallas_call(
        kernel,
        out_shape=jax.ShapeDtypeStruct((B, N, C_outp), out_dtype),
        grid_spec=pltpu.PrefetchScalarGridSpec(
            num_scalar_prefetch=0,
            grid=(B, n_tiles),
            in_specs=[
                pl.BlockSpec((None, None, TP2W, C_in), lambda b, t: (b, t, 0, 0)),  # x tiles
                pl.BlockSpec((C_in, HIDp), lambda b, t: (0, 0)),                    # w1
                pl.BlockSpec((1, HIDp), lambda b, t: (0, 0)),                       # b1
                pl.BlockSpec((9, HIDp), lambda b, t: (0, 0)),                       # dw weight
                pl.BlockSpec((1, HIDp), lambda b, t: (0, 0)),                       # dw bias
                pl.BlockSpec((HIDp, C_outp), lambda b, t: (0, 0)),                  # w2
                pl.BlockSpec((1, C_outp), lambda b, t: (0, 0)),                     # b2
            ],
            out_specs=pl.BlockSpec((None, TH * W, C_outp), lambda b, t: (b, t, 0)),
            scratch_shapes=[pltpu.VMEM((TP2W, HIDp), jnp.float32)],
        ),
        compiler_params=pltpu.CompilerParams(
            dimension_semantics=("parallel", "parallel"),
            vmem_limit_bytes=budget,
        ),
        cost_estimate=pl.CostEstimate(
            flops=flops,
            transcendentals=B * N * HIDp,
            bytes_accessed=bytes_accessed,
        ),
    )(x_tiles, w1, b1, wdw, bdw, w2, b2)

    return y if C_outp == C_out else y[..., :C_out]


# ---------------------------------------------------------------------------
# Pure-JAX reference (matches Mlp.forward with linear=False, drop=0.0).
# `matmul_dtype` mirrors the kernel's MXU input dtype so comparisons are tight.
# ---------------------------------------------------------------------------
def mlp_reference(x, params, H, W, matmul_dtype=jnp.float32):
    B, N, C_in = x.shape
    HID = params["w1"].shape[1]
    C_out = params["w2"].shape[1]
    mm = jnp.dtype(matmul_dtype)

    h = jnp.dot(x.reshape(B * N, C_in).astype(mm), params["w1"].astype(mm),
                preferred_element_type=jnp.float32) + params["b1"]
    h = h.reshape(B, H, W, HID)
    hp = jnp.pad(h, ((0, 0), (1, 1), (1, 1), (0, 0)))
    acc = jnp.zeros_like(h)
    for di in range(3):
        for dj in range(3):
            acc = acc + hp[:, di:di + H, dj:dj + W, :] * params["wdw"][di, dj, :]
    acc = acc + params["bdw"]
    a = jax.nn.gelu(acc, approximate=False)
    y = jnp.dot(a.reshape(B * N, HID).astype(mm), params["w2"].astype(mm),
                preferred_element_type=jnp.float32) + params["b2"]
    return y.reshape(B, N, C_out).astype(x.dtype)


# ---------------------------------------------------------------------------
# Deterministic parameter init (shapes / init scheme from Mlp.__init__)
# ---------------------------------------------------------------------------
def init_params(key, in_features, hidden_features, out_features):
    k1, k2, k3 = jax.random.split(key, 3)
    w1 = (0.02 * jax.random.normal(k1, (in_features, hidden_features))).astype(jnp.float32)
    b1 = jnp.zeros((1, hidden_features), jnp.float32)
    w2 = (0.02 * jax.random.normal(k2, (hidden_features, out_features))).astype(jnp.float32)
    b2 = jnp.zeros((1, out_features), jnp.float32)
    std_dw = float(np.sqrt(2.0 / 9.0))     # Conv2d fan_out = 3*3*dim / groups(=dim) = 9
    wdw = (std_dw * jax.random.normal(k3, (3, 3, hidden_features))).astype(jnp.float32)
    bdw = jnp.zeros((1, hidden_features), jnp.float32)
    return {"w1": w1, "b1": b1, "w2": w2, "b2": b2, "wdw": wdw, "bdw": bdw}


if __name__ == "__main__":
    key = jax.random.PRNGKey(0)
    kx1, kx2, kp1, kp2 = jax.random.split(key, 4)

    B, H, W = 2, 8, 8
    N = H * W

    # Config A: lane-dense channels; forced block_h=4 exercises the row-halo path.
    cin, hid, cout = 128, 256, 128
    x_a = jax.random.normal(kx1, (B, N, cin), dtype=jnp.float32)
    p_a = init_params(kp1, cin, hid, cout)

    y_a = jax.block_until_ready(mlp_forward(x_a, p_a, H=H, W=W, block_h=4))
    ref_a = mlp_reference(x_a, p_a, H, W, matmul_dtype=jnp.bfloat16)
    np.testing.assert_allclose(np.asarray(y_a), np.asarray(ref_a), rtol=1e-2, atol=1e-3)

    # Same config, f32 MXU path + automatic (generation-aware) tile selection.
    y_a32 = jax.block_until_ready(
        mlp_forward(x_a, p_a, H=H, W=W, matmul_dtype=jnp.float32))
    ref_a32 = mlp_reference(x_a, p_a, H, W, matmul_dtype=jnp.float32)
    np.testing.assert_allclose(np.asarray(y_a32), np.asarray(ref_a32), rtol=1e-2, atol=1e-3)

    # Config B: narrow channels (<128 lanes) exercise the lane-padding path + halos.
    cin, hid, cout = 32, 64, 32
    x_b = jax.random.normal(kx2, (B, N, cin), dtype=jnp.float32)
    p_b = init_params(kp2, cin, hid, cout)
    y_b = jax.block_until_ready(mlp_forward(x_b, p_b, H=H, W=W, block_h=2))
    ref_b = mlp_reference(x_b, p_b, H, W, matmul_dtype=jnp.bfloat16)
    np.testing.assert_allclose(np.asarray(y_b), np.asarray(ref_b), rtol=1e-2, atol=1e-3)

    print("KERNEL_OK")
</pallas_src>

<mosaic_0001>
module attributes {stable_mosaic.version = 11 : i64} {
  func.func @_mlp_fused_kernel(%arg0: i32, %arg1: i32, %arg2: memref<1x1x48x128xbf16, #tpu.memory_space<vmem>>, %arg3: memref<128x256xbf16, #tpu.memory_space<vmem>>, %arg4: memref<1x256xf32, #tpu.memory_space<vmem>>, %arg5: memref<9x256xf32, #tpu.memory_space<vmem>>, %arg6: memref<1x256xf32, #tpu.memory_space<vmem>>, %arg7: memref<256x128xbf16, #tpu.memory_space<vmem>>, %arg8: memref<1x128xf32, #tpu.memory_space<vmem>>, %arg9: memref<1x32x128xf32, #tpu.memory_space<vmem>>, %arg10: memref<48x256xf32, #tpu.memory_space<vmem>>) attributes {dimension_semantics = [#tpu.dimension_semantics<parallel>, #tpu.dimension_semantics<parallel>], iteration_bounds = array<i64: 2, 2>, scalar_prefetch = 0 : i64, scratch_operands = 1 : i64, tpu.core_type = #tpu.core_type<tc>, window_params = [{transform_indices = @transform_0, window_bounds = array<i64: 1, 1, 48, 128>}, {pipeline_mode = #tpu.pipeline_mode<synchronous>, transform_indices = @transform_1, window_bounds = array<i64: 128, 256>}, {pipeline_mode = #tpu.pipeline_mode<synchronous>, transform_indices = @transform_2, window_bounds = array<i64: 1, 256>}, {pipeline_mode = #tpu.pipeline_mode<synchronous>, transform_indices = @transform_3, window_bounds = array<i64: 9, 256>}, {pipeline_mode = #tpu.pipeline_mode<synchronous>, transform_indices = @transform_4, window_bounds = array<i64: 1, 256>}, {pipeline_mode = #tpu.pipeline_mode<synchronous>, transform_indices = @transform_5, window_bounds = array<i64: 256, 128>}, {pipeline_mode = #tpu.pipeline_mode<synchronous>, transform_indices = @transform_6, window_bounds = array<i64: 1, 128>}, {transform_indices = @transform_7, window_bounds = array<i64: 1, 32, 128>}]} {
    %c0 = arith.constant 0 : index
    %c0_0 = arith.constant 0 : index
    %c0_1 = arith.constant 0 : index
    %c0_2 = arith.constant 0 : index
    %0 = vector.load %arg2[%c0, %c0_0, %c0_1, %c0_2] : memref<1x1x48x128xbf16, #tpu.memory_space<vmem>>, vector<1x1x48x128xbf16>
    %1 = vector.shape_cast %0 : vector<1x1x48x128xbf16> to vector<48x128xbf16>
    %c0_3 = arith.constant 0 : index
    %c0_4 = arith.constant 0 : index
    %2 = vector.load %arg3[%c0_3, %c0_4] : memref<128x256xbf16, #tpu.memory_space<vmem>>, vector<128x256xbf16>
    %cst = arith.constant dense<0.000000e+00> : vector<48x256xf32>
    %3 = tpu.matmul %1, %2, %cst {dimension_numbers = #tpu.dot_dimension_numbers<[1], [0], [0], [1], [0, 0, 1, 1], [], []>} : vector<48x128xbf16>, vector<128x256xbf16>, vector<48x256xf32> -> vector<48x256xf32>
    %c0_5 = arith.constant 0 : index
    %c0_6 = arith.constant 0 : index
    %4 = vector.load %arg4[%c0_5, %c0_6] : memref<1x256xf32, #tpu.memory_space<vmem>>, vector<1x256xf32>
    %5 = vector.broadcast %4 : vector<1x256xf32> to vector<48x256xf32>
    %6 = arith.addf %3, %5 : vector<48x256xf32>
    %c0_7 = arith.constant 0 : index
    %c0_8 = arith.constant 0 : index
    %7 = vector.load %arg10[%c0_7, %c0_8] : memref<48x256xf32, #tpu.memory_space<vmem>>, vector<48x256xf32>
    tpu.vector_store %arg10[%c0_7, %c0_8], %6 {strides = array<i32>} : memref<48x256xf32, #tpu.memory_space<vmem>>, vector<48x256xf32>,
    %c0_i32 = arith.constant 0 : i32
    %8 = arith.cmpi eq, %arg1, %c0_i32 : i32
    %9 = arith.extui %8 : i1 to i32
    %c0_i32_9 = arith.constant 0 : i32
    %10 = arith.cmpi ne, %9, %c0_i32_9 : i32
    scf.if %10 {
      %cst_62 = arith.constant 0.000000e+00 : f32
      %162 = vector.broadcast %cst_62 : f32 to vector<8x256xf32>
      %c0_63 = arith.constant 0 : index
      %c0_64 = arith.constant 0 : index
      %163 = vector.load %arg10[%c0_63, %c0_64] : memref<48x256xf32, #tpu.memory_space<vmem>>, vector<8x256xf32>
      tpu.vector_store %arg10[%c0_63, %c0_64], %162 {strides = array<i32>} : memref<48x256xf32, #tpu.memory_space<vmem>>, vector<8x256xf32>,
    } else {
    }
    %c1_i32 = arith.constant 1 : i32
    %11 = arith.cmpi eq, %arg1, %c1_i32 : i32
    %12 = arith.extui %11 : i1 to i32
    %c0_i32_10 = arith.constant 0 : i32
    %13 = arith.cmpi ne, %12, %c0_i32_10 : i32
    scf.if %13 {
      %cst_62 = arith.constant 0.000000e+00 : f32
      %162 = vector.broadcast %cst_62 : f32 to vector<8x256xf32>
      %c40 = arith.constant 40 : index
      %c0_63 = arith.constant 0 : index
      %163 = vector.load %arg10[%c40, %c0_63] : memref<48x256xf32, #tpu.memory_space<vmem>>, vector<8x256xf32>
      tpu.vector_store %arg10[%c40, %c0_63], %162 {strides = array<i32>} : memref<48x256xf32, #tpu.memory_space<vmem>>, vector<8x256xf32>,
    } else {
    }
    %14 = tpu.iota {dimensions = array<i32: 0>} : vector<32x1xi32>
    %c8_i32 = arith.constant 8 : i32
    %c0_i32_11 = arith.constant 0 : i32
    %15 = arith.cmpi eq, %c8_i32, %c0_i32_11 : i32
    %c1_i32_12 = arith.constant 1 : i32
    %16 = arith.select %15, %c1_i32_12, %c8_i32 : i32
    %17 = vector.broadcast %16 : i32 to vector<32x1xi32>
    %18 = arith.remsi %14, %17 : vector<32x1xi32>
    %c0_i32_13 = arith.constant 0 : i32
    %19 = vector.broadcast %c0_i32_13 : i32 to vector<32x1xi32>
    %20 = arith.cmpi ne, %18, %19 : vector<32x1xi32>
    %c0_i32_14 = arith.constant 0 : i32
    %21 = vector.broadcast %c0_i32_14 : i32 to vector<32x1xi32>
    %22 = arith.cmpi slt, %18, %21 : vector<32x1xi32>
    %c0_i32_15 = arith.constant 0 : i32
    %23 = arith.cmpi slt, %16, %c0_i32_15 : i32
    %24 = vector.broadcast %23 : i1 to vector<32x1xi1>
    %25 = vector.broadcast %24 : vector<32x1xi1> to vector<32x1xi1>
    %26 = arith.xori %22, %25 : vector<32x1xi1>
    %27 = arith.andi %26, %20 : vector<32x1xi1>
    %28 = vector.broadcast %16 : i32 to vector<32x1xi32>
    %29 = arith.addi %18, %28 : vector<32x1xi32>
    %30 = arith.select %27, %29, %18 : vector<32x1xi1>, vector<32x1xi32>
    %c0_i32_16 = arith.constant 0 : i32
    %31 = vector.broadcast %c0_i32_16 : i32 to vector<32x1xi32>
    %32 = arith.cmpi ne, %30, %31 : vector<32x1xi32>
    %c7_i32 = arith.constant 7 : i32
    %33 = vector.broadcast %c7_i32 : i32 to vector<32x1xi32>
    %34 = arith.cmpi ne, %30, %33 : vector<32x1xi32>
    %c0_17 = arith.constant 0 : index
    %c0_18 = arith.constant 0 : index
    %35 = vector.load %arg5[%c0_17, %c0_18] : memref<9x256xf32, #tpu.memory_space<vmem>>, vector<9x256xf32>
    %cst_19 = arith.constant 0.000000e+00 : f32
    %36 = vector.broadcast %cst_19 : f32 to vector<32x256xf32>
    %c0_20 = arith.constant 0 : index
    %c0_21 = arith.constant 0 : index
    %37 = vector.load %arg10[%c0_20, %c0_21] : memref<48x256xf32, #tpu.memory_space<vmem>>, vector<32x256xf32>
    %38 = vector.extract_strided_slice %35 {offsets = [1, 0], sizes = [1, 256], strides = [1, 1]} : vector<9x256xf32> to vector<1x256xf32>
    %39 = vector.broadcast %38 : vector<1x256xf32> to vector<32x256xf32>
    %40 = arith.mulf %37, %39 : vector<32x256xf32>
    %41 = arith.addf %36, %40 : vector<32x256xf32>
    %c1_i32_22 = arith.constant 1 : i32
    %42 = tpu.dynamic_rotate %37 by %c1_i32_22 dim 0 : vector<32x256xf32>, i32 -> vector<32x256xf32>
    %cst_23 = arith.constant 0.000000e+00 : f32
    %43 = vector.shape_cast %32 : vector<32x1xi1> to vector<32x1xi1>
    %44 = vector.broadcast %43 : vector<32x1xi1> to vector<32x256xi1>
    %45 = vector.broadcast %cst_23 : f32 to vector<32x256xf32>
    %46 = arith.select %44, %42, %45 : vector<32x256xi1>, vector<32x256xf32>
    %47 = vector.extract_strided_slice %35 {offsets = [0, 0], sizes = [1, 256], strides = [1, 1]} : vector<9x256xf32> to vector<1x256xf32>
    %48 = vector.broadcast %47 : vector<1x256xf32> to vector<32x256xf32>
    %49 = arith.mulf %46, %48 : vector<32x256xf32>
    %50 = arith.addf %41, %49 : vector<32x256xf32>
    %c31_i32 = arith.constant 31 : i32
    %51 = tpu.dynamic_rotate %37 by %c31_i32 dim 0 : vector<32x256xf32>, i32 -> vector<32x256xf32>
    %cst_24 = arith.constant 0.000000e+00 : f32
    %52 = vector.shape_cast %34 : vector<32x1xi1> to vector<32x1xi1>
    %53 = vector.broadcast %52 : vector<32x1xi1> to vector<32x256xi1>
    %54 = vector.broadcast %cst_24 : f32 to vector<32x256xf32>
    %55 = arith.select %53, %51, %54 : vector<32x256xi1>, vector<32x256xf32>
    %56 = vector.extract_strided_slice %35 {offsets = [2, 0], sizes = [1, 256], strides = [1, 1]} : vector<9x256xf32> to vector<1x256xf32>
    %57 = vector.broadcast %56 : vector<1x256xf32> to vector<32x256xf32>
    %58 = arith.mulf %55, %57 : vector<32x256xf32>
    %59 = arith.addf %50, %58 : vector<32x256xf32>
    %c8 = arith.constant 8 : index
    %c0_25 = arith.constant 0 : index
    %60 = vector.load %arg10[%c8, %c0_25] : memref<48x256xf32, #tpu.memory_space<vmem>>, vector<32x256xf32>
    %61 = vector.extract_strided_slice %35 {offsets = [4, 0], sizes = [1, 256], strides = [1, 1]} : vector<9x256xf32> to vector<1x256xf32>
    %62 = vector.broadcast %61 : vector<1x256xf32> to vector<32x256xf32>
    %63 = arith.mulf %60, %62 : vector<32x256xf32>
    %64 = arith.addf %59, %63 : vector<32x256xf32>
    %c1_i32_26 = arith.constant 1 : i32
    %65 = tpu.dynamic_rotate %60 by %c1_i32_26 dim 0 : vector<32x256xf32>, i32 -> vector<32x256xf32>
    %cst_27 = arith.constant 0.000000e+00 : f32
    %66 = vector.shape_cast %32 : vector<32x1xi1> to vector<32x1xi1>
    %67 = vector.broadcast %66 : vector<32x1xi1> to vector<32x256xi1>
    %68 = vector.broadcast %cst_27 : f32 to vector<32x256xf32>
    %69 = arith.select %67, %65, %68 : vector<32x256xi1>, vector<32x256xf32>
    %70 = vector.extract_strided_slice %35 {offsets = [3, 0], sizes = [1, 256], strides = [1, 1]} : vector<9x256xf32> to vector<1x256xf32>
    %71 = vector.broadcast %70 : vector<1x256xf32> to vector<32x256xf32>
    %72 = arith.mulf %69, %71 : vector<32x256xf32>
    %73 = arith.addf %64, %72 : vector<32x256xf32>
    %c31_i32_28 = arith.constant 31 : i32
    %74 = tpu.dynamic_rotate %60 by %c31_i32_28 dim 0 : vector<32x256xf32>, i32 -> vector<32x256xf32>
    %cst_29 = arith.constant 0.000000e+00 : f32
    %75 = vector.shape_cast %34 : vector<32x1xi1> to vector<32x1xi1>
    %76 = vector.broadcast %75 : vector<32x1xi1> to vector<32x256xi1>
    %77 = vector.broadcast %cst_29 : f32 to vector<32x256xf32>
    %78 = arith.select %76, %74, %77 : vector<32x256xi1>, vector<32x256xf32>
    %79 = vector.extract_strided_slice %35 {offsets = [5, 0], sizes = [1, 256], strides = [1, 1]} : vector<9x256xf32> to vector<1x256xf32>
    %80 = vector.broadcast %79 : vector<1x256xf32> to vector<32x256xf32>
    %81 = arith.mulf %78, %80 : vector<32x256xf32>
    %82 = arith.addf %73, %81 : vector<32x256xf32>
    %c16 = arith.constant 16 : index
    %c0_30 = arith.constant 0 : index
    %83 = vector.load %arg10[%c16, %c0_30] : memref<48x256xf32, #tpu.memory_space<vmem>>, vector<32x256xf32>
    %84 = vector.extract_strided_slice %35 {offsets = [7, 0], sizes = [1, 256], strides = [1, 1]} : vector<9x256xf32> to vector<1x256xf32>
    %85 = vector.broadcast %84 : vector<1x256xf32> to vector<32x256xf32>
    %86 = arith.mulf %83, %85 : vector<32x256xf32>
    %87 = arith.addf %82, %86 : vector<32x256xf32>
    %c1_i32_31 = arith.constant 1 : i32
    %88 = tpu.dynamic_rotate %83 by %c1_i32_31 dim 0 : vector<32x256xf32>, i32 -> vector<32x256xf32>
    %cst_32 = arith.constant 0.000000e+00 : f32
    %89 = vector.shape_cast %32 : vector<32x1xi1> to vector<32x1xi1>
    %90 = vector.broadcast %89 : vector<32x1xi1> to vector<32x256xi1>
    %91 = vector.broadcast %cst_32 : f32 to vector<32x256xf32>
    %92 = arith.select %90, %88, %91 : vector<32x256xi1>, vector<32x256xf32>
    %93 = vector.extract_strided_slice %35 {offsets = [6, 0], sizes = [1, 256], strides = [1, 1]} : vector<9x256xf32> to vector<1x256xf32>
    %94 = vector.broadcast %93 : vector<1x256xf32> to vector<32x256xf32>
    %95 = arith.mulf %92, %94 : vector<32x256xf32>
    %96 = arith.addf %87, %95 : vector<32x256xf32>
    %c31_i32_33 = arith.constant 31 : i32
    %97 = tpu.dynamic_rotate %83 by %c31_i32_33 dim 0 : vector<32x256xf32>, i32 -> vector<32x256xf32>
    %cst_34 = arith.constant 0.000000e+00 : f32
    %98 = vector.shape_cast %34 : vector<32x1xi1> to vector<32x1xi1>
    %99 = vector.broadcast %98 : vector<32x1xi1> to vector<32x256xi1>
    %100 = vector.broadcast %cst_34 : f32 to vector<32x256xf32>
    %101 = arith.select %99, %97, %100 : vector<32x256xi1>, vector<32x256xf32>
    %102 = vector.extract_strided_slice %35 {offsets = [8, 0], sizes = [1, 256], strides = [1, 1]} : vector<9x256xf32> to vector<1x256xf32>
    %103 = vector.broadcast %102 : vector<1x256xf32> to vector<32x256xf32>
    %104 = arith.mulf %101, %103 : vector<32x256xf32>
    %105 = arith.addf %96, %104 : vector<32x256xf32>
    %c0_35 = arith.constant 0 : index
    %c0_36 = arith.constant 0 : index
    %106 = vector.load %arg6[%c0_35, %c0_36] : memref<1x256xf32, #tpu.memory_space<vmem>>, vector<1x256xf32>
    %107 = vector.broadcast %106 : vector<1x256xf32> to vector<32x256xf32>
    %108 = arith.addf %105, %107 : vector<32x256xf32>
    %cst_37 = arith.constant 5.000000e-01 : f32
    %109 = vector.broadcast %cst_37 : f32 to vector<32x256xf32>
    %110 = arith.mulf %109, %108 : vector<32x256xf32>
    %cst_38 = arith.constant 0.707106769 : f32
    %111 = vector.broadcast %cst_38 : f32 to vector<32x256xf32>
    %112 = arith.mulf %108, %111 : vector<32x256xf32>
    %cst_39 = arith.constant 0.000000e+00 : f32
    %113 = vector.broadcast %cst_39 : f32 to vector<32x256xf32>
    %114 = arith.cmpf olt, %112, %113 : vector<32x256xf32>
    %cst_40 = arith.constant 0.000000e+00 : f32
    %115 = vector.broadcast %cst_40 : f32 to vector<32x256xf32>
    %116 = arith.subf %115, %112 : vector<32x256xf32>
    %117 = arith.select %114, %116, %112 : vector<32x256xi1>, vector<32x256xf32>
    %cst_41 = arith.constant 0.327591091 : f32
    %118 = vector.broadcast %cst_41 : f32 to vector<32x256xf32>
    %119 = arith.mulf %118, %117 : vector<32x256xf32>
    %cst_42 = arith.constant 1.000000e+00 : f32
    %120 = vector.broadcast %cst_42 : f32 to vector<32x256xf32>
    %121 = arith.addf %120, %119 : vector<32x256xf32>
    %cst_43 = arith.constant 1.000000e+00 : f32
    %122 = vector.broadcast %cst_43 : f32 to vector<32x256xf32>
    %123 = arith.divf %122, %121 : vector<32x256xf32>
    %cst_44 = arith.constant 1.06140542 : f32
    %124 = vector.broadcast %cst_44 : f32 to vector<32x256xf32>
    %125 = arith.mulf %123, %124 : vector<32x256xf32>
    %cst_45 = arith.constant -1.45315206 : f32
    %126 = vector.broadcast %cst_45 : f32 to vector<32x256xf32>
    %127 = arith.addf %126, %125 : vector<32x256xf32>
    %128 = arith.mulf %123, %127 : vector<32x256xf32>
    %cst_46 = arith.constant 1.42141378 : f32
    %129 = vector.broadcast %cst_46 : f32 to vector<32x256xf32>
    %130 = arith.addf %129, %128 : vector<32x256xf32>
    %131 = arith.mulf %123, %130 : vector<32x256xf32>
    %cst_47 = arith.constant -0.284496725 : f32
    %132 = vector.broadcast %cst_47 : f32 to vector<32x256xf32>
    %133 = arith.addf %132, %131 : vector<32x256xf32>
    %134 = arith.mulf %123, %133 : vector<32x256xf32>
    %cst_48 = arith.constant 0.254829586 : f32
    %135 = vector.broadcast %cst_48 : f32 to vector<32x256xf32>
    %136 = arith.addf %135, %134 : vector<32x256xf32>
    %137 = arith.mulf %123, %136 : vector<32x256xf32>
    %cst_49 = arith.constant 0.000000e+00 : f32
    %138 = vector.broadcast %cst_49 : f32 to vector<32x256xf32>
    %139 = arith.subf %138, %117 : vector<32x256xf32>
    %140 = arith.mulf %139, %117 : vector<32x256xf32>
    %141 = math.exp %140 : vector<32x256xf32>
    %142 = arith.mulf %137, %141 : vector<32x256xf32>
    %cst_50 = arith.constant 1.000000e+00 : f32
    %143 = vector.broadcast %cst_50 : f32 to vector<32x256xf32>
    %144 = arith.subf %143, %142 : vector<32x256xf32>
    %cst_51 = arith.constant 0.000000e+00 : f32
    %145 = vector.broadcast %cst_51 : f32 to vector<32x256xf32>
    %146 = arith.cmpf olt, %112, %145 : vector<32x256xf32>
    %cst_52 = arith.constant 0.000000e+00 : f32
    %147 = vector.broadcast %cst_52 : f32 to vector<32x256xf32>
    %148 = arith.subf %147, %144 : vector<32x256xf32>
    %149 = arith.select %146, %148, %144 : vector<32x256xi1>, vector<32x256xf32>
    %cst_53 = arith.constant 1.000000e+00 : f32
    %150 = vector.broadcast %cst_53 : f32 to vector<32x256xf32>
    %151 = arith.addf %150, %149 : vector<32x256xf32>
    %152 = arith.mulf %110, %151 : vector<32x256xf32>
    %153 = arith.truncf %152 : vector<32x256xf32> to vector<32x256xbf16>
    %c0_54 = arith.constant 0 : index
    %c0_55 = arith.constant 0 : index
    %154 = vector.load %arg7[%c0_54, %c0_55] : memref<256x128xbf16, #tpu.memory_space<vmem>>, vector<256x128xbf16>
    %cst_56 = arith.constant dense<0.000000e+00> : vector<32x128xf32>
    %155 = tpu.matmul %153, %154, %cst_56 {dimension_numbers = #tpu.dot_dimension_numbers<[1], [0], [0], [1], [0, 0, 1, 1], [], []>} : vector<32x256xbf16>, vector<256x128xbf16>, vector<32x128xf32> -> vector<32x128xf32>
    %c0_57 = arith.constant 0 : index
    %c0_58 = arith.constant 0 : index
    %156 = vector.load %arg8[%c0_57, %c0_58] : memref<1x128xf32, #tpu.memory_space<vmem>>, vector<1x128xf32>
    %157 = vector.broadcast %156 : vector<1x128xf32> to vector<32x128xf32>
    %158 = arith.addf %155, %157 : vector<32x128xf32>
    %c0_59 = arith.constant 0 : index
    %c0_60 = arith.constant 0 : index
    %c0_61 = arith.constant 0 : index
    %159 = vector.load %arg9[%c0_59, %c0_60, %c0_61] : memref<1x32x128xf32, #tpu.memory_space<vmem>>, vector<1x32x128xf32>
    %160 = vector.shape_cast %159 : vector<1x32x128xf32> to vector<32x128xf32>
    %161 = vector.shape_cast %158 : vector<32x128xf32> to vector<1x32x128xf32>
    tpu.vector_store %arg9[%c0_59, %c0_60, %c0_61], %161 {strides = array<i32>} : memref<1x32x128xf32, #tpu.memory_space<vmem>>, vector<1x32x128xf32>,
    return
  }
  func.func @transform_0(%arg0: i32, %arg1: i32) -> (i32, i32, i32, i32) {
    %c0_i32 = arith.constant 0 : i32
    %c0_i32_0 = arith.constant 0 : i32
    %c0_i32_1 = arith.constant 0 : i32
    return %arg0, %arg1, %c0_i32, %c0_i32_0 : i32, i32, i32, i32
  }
  func.func @transform_1(%arg0: i32, %arg1: i32) -> (i32, i32) {
    %c0_i32 = arith.constant 0 : i32
    %c0_i32_0 = arith.constant 0 : i32
    %c0_i32_1 = arith.constant 0 : i32
    return %c0_i32, %c0_i32_0 : i32, i32
  }
  func.func @transform_2(%arg0: i32, %arg1: i32) -> (i32, i32) {
    %c0_i32 = arith.constant 0 : i32
    %c0_i32_0 = arith.constant 0 : i32
    %c0_i32_1 = arith.constant 0 : i32
    return %c0_i32, %c0_i32_0 : i32, i32
  }
  func.func @transform_3(%arg0: i32, %arg1: i32) -> (i32, i32) {
    %c0_i32 = arith.constant 0 : i32
    %c0_i32_0 = arith.constant 0 : i32
    %c0_i32_1 = arith.constant 0 : i32
    return %c0_i32, %c0_i32_0 : i32, i32
  }
  func.func @transform_4(%arg0: i32, %arg1: i32) -> (i32, i32) {
    %c0_i32 = arith.constant 0 : i32
    %c0_i32_0 = arith.constant 0 : i32
    %c0_i32_1 = arith.constant 0 : i32
    return %c0_i32, %c0_i32_0 : i32, i32
  }
  func.func @transform_5(%arg0: i32, %arg1: i32) -> (i32, i32) {
    %c0_i32 = arith.constant 0 : i32
    %c0_i32_0 = arith.constant 0 : i32
    %c0_i32_1 = arith.constant 0 : i32
    return %c0_i32, %c0_i32_0 : i32, i32
  }
  func.func @transform_6(%arg0: i32, %arg1: i32) -> (i32, i32) {
    %c0_i32 = arith.constant 0 : i32
    %c0_i32_0 = arith.constant 0 : i32
    %c0_i32_1 = arith.constant 0 : i32
    return %c0_i32, %c0_i32_0 : i32, i32
  }
  func.func @transform_7(%arg0: i32, %arg1: i32) -> (i32, i32, i32) {
    %c0_i32 = arith.constant 0 : i32
    %c0_i32_0 = arith.constant 0 : i32
    return %arg0, %arg1, %c0_i32 : i32, i32, i32
  }
}

</mosaic_0001>

<llo_original>
// kernel: mlp_forward.1
$region0: #{mlp_forward.1}
  #allocation0 [shape = 'u32[]', space=smem, size = 0x4, offset = 0x4, fixed_abs, tag = 'smem constant byte address 0x4 - core index']
  #allocation1 [shape = 'u32[144,128]{1,0:T(1,128)}', space=vmem, size = 0x12000, scoped, tag = 'internal scratch']
  #allocation2 [shape = 'f32[48,256]{1,0:T(8,128)}', space=vmem, size = 0xc000, scoped, tag = 'scratch operand']
  %s0 = inlined_call_operand.vmem [shape: bf16[2,2,48,128], index: 0, kind: input, shape index: {}]
  %s1 = inlined_call_operand.vmem [shape: bf16[128,256], index: 1, kind: input, shape index: {}]
  %s2 = inlined_call_operand.vmem [shape: f32[1,256], index: 2, kind: input, shape index: {}]
  %s3 = inlined_call_operand.vmem [shape: f32[9,256], index: 3, kind: input, shape index: {}]
  %s4 = inlined_call_operand.vmem [shape: f32[1,256], index: 4, kind: input, shape index: {}]
  %s5 = inlined_call_operand.vmem [shape: bf16[256,128], index: 5, kind: input, shape index: {}]
  %s6 = inlined_call_operand.vmem [shape: f32[1,128], index: 6, kind: input, shape index: {}]
  %s7 = inlined_call_operand.hbm [shape: f32[2,64,128], index: 7, kind: output, shape index: {}]
  %s8 = sld [smem:[#allocation0]]
  $region69: #{mlp_forward.1} parent=0
    _
  %s10 = ssub.s32 1, %s8
  %s11 = scalar_select 0, %s10, %s8
  $region1: #{mlp_forward.1} parent=0
    #allocation3 [shape = 'u8[32768]{0}', space=vmem, size = 0x8000, scoped, tag = 'output window, operand 0']
    #allocation4 [shape = 's32[2]{0}', space=sflag, size = 0x8, scoped, tag = 'scoped memory for mlp_forward.1']
    %12 = vsyncpa [#allocation4], 0
    %s13 = scalar_lea.sflag [#allocation4], 1
    %14 = vsyncpa %s13, 0
    loop: start=0, step=1, limit=6
    $region2: #{mlp_forward.1} parent=1 // loop_pre_header
      _
    $region3: #{mlp_forward.1} parent=1 // loop_header
      %s16 = sphi 0, %s20
      %p17 = scmp.ge.s32.totalorder %s16, 6
      %s23 = sphi 0, %s35
      %s24 = sphi 0, %s31
      %s25 = sphi 0, %s23
      %s26 = sphi 0, %s24
      %s27 = sphi 0, %s25
      %s28 = sphi 0, %s26
      %s40 = sphi 0, %s42
      %s43 = sphi 0, %s40
      %s44 = sphi 0, %s43
      %s60 = sphi 0, %s44
      %s64 = sphi 0, %s64
      %s66 = sphi 0, %s64
      %s67 = sphi 0, %s66
      %s81 = sphi 0, %s67
      %s85 = sphi 0, %s85
      %s87 = sphi 0, %s85
      %s88 = sphi 0, %s87
      %s102 = sphi 0, %s88
      %s106 = sphi 0, %s106
      %s108 = sphi 0, %s106
      %s109 = sphi 0, %s108
      %s123 = sphi 0, %s109
      %s127 = sphi 0, %s127
      %s129 = sphi 0, %s127
      %s130 = sphi 0, %s129
      %s144 = sphi 0, %s130
      %s148 = sphi 0, %s148
      %s150 = sphi 0, %s148
      %s151 = sphi 0, %s150
      %s165 = sphi 0, %s151
      %s169 = sphi 0, %s169
      %s171 = sphi 0, %s169
      %s172 = sphi 0, %s171
      %s186 = sphi 0, %s172
      %s194 = sphi 0, %s196
      %s197 = sphi 0, %s194
      %s198 = sphi 0, %s197
      %s214 = sphi 0, %s198
    $region4: #{mlp_forward.1} parent=1 // loop_header_branch
      %19 = sbr.rel (%p17) target = $region8
    $region5: #{mlp_forward.1} parent=1 // loop_body
      %s21 = ssub.s32 %s16, 1
      %s22 = ssub.s32 %s16, 2
      %s29 = sadd.s32 1, %s24
      %p30 = scmp.ge.s32.totalorder %s29, 2
      %s31 = scalar_select %p30, 0, %s29
      %s32 = sadd.s32 1, %s23
      %s33 = scalar_select %p30, %s32, %s23
      %p34 = scmp.ge.s32.totalorder %s33, 2
      %s35 = scalar_select %p34, 0, %s33
      %s36 = ssub.s32 %s23, %s35
      %s37 = ssub.s32 %s24, %s31
      %s38 = sor.u32 %s36, %s37
      %p39 = scmp.eq.s32.totalorder %s38, 0
      %s41 = sadd.s32 %s40, 1
      %s42 = scalar_select %p39, %s40, %s41
      %p45 = pneg %p39
      %p46 = scmp.eq.s32.totalorder %s16, 3
      %p47 = por %p45, %p46
      %p48 = scmp.ne.s32.totalorder %s40, %s43
      %p49 = scmp.eq.s32.totalorder %s16, 0
      %p50 = por %p48, %p49
      %p51 = scmp.ne.s32.totalorder %s40, %s43
      %p52 = scmp.eq.s32.totalorder %s21, 3
      %p53 = por %p51, %p52
      %p54 = scmp.ne.s32.totalorder %s43, %s44
      %p55 = scmp.eq.s32.totalorder %s21, 0
      %p56 = por %p54, %p55
      %p57 = scmp.ne.s32.totalorder %s43, %s44
      %p58 = scmp.eq.s32.totalorder %s22, 3
      %p59 = por %p57, %p58
      %p61 = scmp.ne.s32.totalorder %s44, %s60
      %p62 = scmp.eq.s32.totalorder %s22, 0
      %p63 = por %p61, %p62
      %s65 = sadd.s32 %s64, 1
      %p68 = scmp.eq.s32.totalorder %s16, 3
      %p69 = scmp.ne.s32.totalorder %s64, %s66
      %p70 = scmp.eq.s32.totalorder %s16, 0
      %p71 = por %p69, %p70
      %p72 = scmp.ne.s32.totalorder %s64, %s66
      %p73 = scmp.eq.s32.totalorder %s21, 3
      %p74 = por %p72, %p73
      %p75 = scmp.ne.s32.totalorder %s66, %s67
      %p76 = scmp.eq.s32.totalorder %s21, 0
      %p77 = por %p75, %p76
      %p78 = scmp.ne.s32.totalorder %s66, %s67
      %p79 = scmp.eq.s32.totalorder %s22, 3
      %p80 = por %p78, %p79
      %p82 = scmp.ne.s32.totalorder %s67, %s81
      %p83 = scmp.eq.s32.totalorder %s22, 0
      %p84 = por %p82, %p83
      %s86 = sadd.s32 %s85, 1
      %p89 = scmp.eq.s32.totalorder %s16, 3
      %p90 = scmp.ne.s32.totalorder %s85, %s87
      %p91 = scmp.eq.s32.totalorder %s16, 0
      %p92 = por %p90, %p91
      %p93 = scmp.ne.s32.totalorder %s85, %s87
      %p94 = scmp.eq.s32.totalorder %s21, 3
      %p95 = por %p93, %p94
      %p96 = scmp.ne.s32.totalorder %s87, %s88
      %p97 = scmp.eq.s32.totalorder %s21, 0
      %p98 = por %p96, %p97
      %p99 = scmp.ne.s32.totalorder %s87, %s88
      %p100 = scmp.eq.s32.totalorder %s22, 3
      %p101 = por %p99, %p100
      %p103 = scmp.ne.s32.totalorder %s88, %s102
      %p104 = scmp.eq.s32.totalorder %s22, 0
      %p105 = por %p103, %p104
      %s107 = sadd.s32 %s106, 1
      %p110 = scmp.eq.s32.totalorder %s16, 3
      %p111 = scmp.ne.s32.totalorder %s106, %s108
      %p112 = scmp.eq.s32.totalorder %s16, 0
      %p113 = por %p111, %p112
      %p114 = scmp.ne.s32.totalorder %s106, %s108
      %p115 = scmp.eq.s32.totalorder %s21, 3
      %p116 = por %p114, %p115
      %p117 = scmp.ne.s32.totalorder %s108, %s109
      %p118 = scmp.eq.s32.totalorder %s21, 0
      %p119 = por %p117, %p118
      %p120 = scmp.ne.s32.totalorder %s108, %s109
      %p121 = scmp.eq.s32.totalorder %s22, 3
      %p122 = por %p120, %p121
      %p124 = scmp.ne.s32.totalorder %s109, %s123
      %p125 = scmp.eq.s32.totalorder %s22, 0
      %p126 = por %p124, %p125
      %s128 = sadd.s32 %s127, 1
      %p131 = scmp.eq.s32.totalorder %s16, 3
      %p132 = scmp.ne.s32.totalorder %s127, %s129
      %p133 = scmp.eq.s32.totalorder %s16, 0
      %p134 = por %p132, %p133
      %p135 = scmp.ne.s32.totalorder %s127, %s129
      %p136 = scmp.eq.s32.totalorder %s21, 3
      %p137 = por %p135, %p136
      %p138 = scmp.ne.s32.totalorder %s129, %s130
      %p139 = scmp.eq.s32.totalorder %s21, 0
      %p140 = por %p138, %p139
      %p141 = scmp.ne.s32.totalorder %s129, %s130
      %p142 = scmp.eq.s32.totalorder %s22, 3
      %p143 = por %p141, %p142
      %p145 = scmp.ne.s32.totalorder %s130, %s144
      %p146 = scmp.eq.s32.totalorder %s22, 0
      %p147 = por %p145, %p146
      %s149 = sadd.s32 %s148, 1
      %p152 = scmp.eq.s32.totalorder %s16, 3
      %p153 = scmp.ne.s32.totalorder %s148, %s150
      %p154 = scmp.eq.s32.totalorder %s16, 0
      %p155 = por %p153, %p154
      %p156 = scmp.ne.s32.totalorder %s148, %s150
      %p157 = scmp.eq.s32.totalorder %s21, 3
      %p158 = por %p156, %p157
      %p159 = scmp.ne.s32.totalorder %s150, %s151
      %p160 = scmp.eq.s32.totalorder %s21, 0
      %p161 = por %p159, %p160
      %p162 = scmp.ne.s32.totalorder %s150, %s151
      %p163 = scmp.eq.s32.totalorder %s22, 3
      %p164 = por %p162, %p163
      %p166 = scmp.ne.s32.totalorder %s151, %s165
      %p167 = scmp.eq.s32.totalorder %s22, 0
      %p168 = por %p166, %p167
      %s170 = sadd.s32 %s169, 1
      %p173 = scmp.eq.s32.totalorder %s16, 3
      %p174 = scmp.ne.s32.totalorder %s169, %s171
      %p175 = scmp.eq.s32.totalorder %s16, 0
      %p176 = por %p174, %p175
      %p177 = scmp.ne.s32.totalorder %s169, %s171
      %p178 = scmp.eq.s32.totalorder %s21, 3
      %p179 = por %p177, %p178
      %p180 = scmp.ne.s32.totalorder %s171, %s172
      %p181 = scmp.eq.s32.totalorder %s21, 0
      %p182 = por %p180, %p181
      %p183 = scmp.ne.s32.totalorder %s171, %s172
      %p184 = scmp.eq.s32.totalorder %s22, 3
      %p185 = por %p183, %p184
      %p187 = scmp.ne.s32.totalorder %s172, %s186
      %p188 = scmp.eq.s32.totalorder %s22, 0
      %p189 = por %p187, %p188
      %s190 = ssub.s32 %s23, %s35
      %s191 = ssub.s32 %s24, %s31
      %s192 = sor.u32 %s190, %s191
      %p193 = scmp.eq.s32.totalorder %s192, 0
      %s195 = sadd.s32 %s194, 1
      %s196 = scalar_select %p193, %s194, %s195
      %p199 = pneg %p193
      %p200 = scmp.eq.s32.totalorder %s16, 3
      %p201 = por %p199, %p200
      %p202 = scmp.ne.s32.totalorder %s194, %s197
      %p203 = scmp.eq.s32.totalorder %s16, 0
      %p204 = por %p202, %p203
      %p205 = scmp.ne.s32.totalorder %s194, %s197
      %p206 = scmp.eq.s32.totalorder %s21, 3
      %p207 = por %p205, %p206
      %p208 = scmp.ne.s32.totalorder %s197, %s198
      %p209 = scmp.eq.s32.totalorder %s21, 0
      %p210 = por %p208, %p209
      %p211 = scmp.ne.s32.totalorder %s197, %s198
      %p212 = scmp.eq.s32.totalorder %s22, 3
      %p213 = por %p211, %p212
      %p215 = scmp.ne.s32.totalorder %s198, %s214
      %p216 = scmp.eq.s32.totalorder %s22, 0
      %p217 = por %p215, %p216
      %p218 = scmp.le.s32.totalorder 1, %s16
      %p219 = scmp.lt.s32.totalorder %s16, 5
      %p220 = pnand %p218, %p219
      %p221 = pneg %p220
      // Predicated region
      $region9: #{mlp_forward.1} parent=5 // pred_check
        _
      $region10: #{mlp_forward.1} parent=5 // pred_check_branch
        %223 = sbr.rel (%p220) target = $region12
      $region11: #{mlp_forward.1} parent=5 // pred_region
        %s224 = ssub.s32 %s16, 1
        // Predicated region
        $region13: #{mlp_forward.1} parent=11 // pred_check
          %p225 = pneg %p77
        $region14: #{mlp_forward.1} parent=11 // pred_check_branch
          %227 = sbr.rel (%p225) target = $region16
        $region15: #{mlp_forward.1} parent=11 // pred_region
          _
        $region16: #{mlp_forward.1} parent=11 // pred_fallthru
          _
        // Predicated region
        $region17: #{mlp_forward.1} parent=11 // pred_check
          %p228 = pneg %p98
        $region18: #{mlp_forward.1} parent=11 // pred_check_branch
          %230 = sbr.rel (%p228) target = $region20
        $region19: #{mlp_forward.1} parent=11 // pred_region
          _
        $region20: #{mlp_forward.1} parent=11 // pred_fallthru
          _
        // Predicated region
        $region21: #{mlp_forward.1} parent=11 // pred_check
          %p231 = pneg %p119
        $region22: #{mlp_forward.1} parent=11 // pred_check_branch
          %233 = sbr.rel (%p231) target = $region24
        $region23: #{mlp_forward.1} parent=11 // pred_region
          _
        $region24: #{mlp_forward.1} parent=11 // pred_fallthru
          _
        // Predicated region
        $region25: #{mlp_forward.1} parent=11 // pred_check
          %p234 = pneg %p140
        $region26: #{mlp_forward.1} parent=11 // pred_check_branch
          %236 = sbr.rel (%p234) target = $region28
        $region27: #{mlp_forward.1} parent=11 // pred_region
          _
        $region28: #{mlp_forward.1} parent=11 // pred_fallthru
          _
        // Predicated region
        $region29: #{mlp_forward.1} parent=11 // pred_check
          %p237 = pneg %p161
        $region30: #{mlp_forward.1} parent=11 // pred_check_branch
          %239 = sbr.rel (%p237) target = $region32
        $region31: #{mlp_forward.1} parent=11 // pred_region
          _
        $region32: #{mlp_forward.1} parent=11 // pred_fallthru
          _
        // Predicated region
        $region33: #{mlp_forward.1} parent=11 // pred_check
          %p240 = pneg %p182
        $region34: #{mlp_forward.1} parent=11 // pred_check_branch
          %242 = sbr.rel (%p240) target = $region36
        $region35: #{mlp_forward.1} parent=11 // pred_region
          _
        $region36: #{mlp_forward.1} parent=11 // pred_fallthru
          _
      $region12: #{mlp_forward.1} parent=5 // pred_fallthru
        _
      %p243 = scmp.lt.s32.totalorder %s16, 4
      // Predicated region
      $region37: #{mlp_forward.1} parent=5 // pred_check
        %p244 = pneg %p243
      $region38: #{mlp_forward.1} parent=5 // pred_check_branch
        %246 = sbr.rel (%p244) target = $region40
      $region39: #{mlp_forward.1} parent=5 // pred_region
        // Predicated region
        $region41: #{mlp_forward.1} parent=39 // pred_check
          %p247 = pneg %p50
        $region42: #{mlp_forward.1} parent=39 // pred_check_branch
          %249 = sbr.rel (%p247) target = $region44
        $region43: #{mlp_forward.1} parent=39 // pred_region
          %p250 = scmp.lt.s32.totalorder %s23, 1
          %s251 = scalar_select %p250, %s23, 1
          %p252 = scmp.lt.s32.totalorder %s24, 1
          %s253 = scalar_select %p252, %s24, 1
          %s254 = smul.addr %s253, 6
          %s255 = smul.addr %s251, 12
          %s256 = sadd.s32 %s254, %s255
          %s257 = smul.addr %s256, 4
          %s258 = scalar_lea.vmem %s0, %s257
        $region44: #{mlp_forward.1} parent=39 // pred_fallthru
          _
      $region40: #{mlp_forward.1} parent=5 // pred_fallthru
        _
      %p259 = scmp.le.s32.totalorder 1, %s16
      %p260 = scmp.lt.s32.totalorder %s16, 5
      %p261 = pnand %p259, %p260
      %p262 = pneg %p261
      // Predicated region
      $region45: #{mlp_forward.1} parent=5 // pred_check
        _
      $region46: #{mlp_forward.1} parent=5 // pred_check_branch
        %264 = sbr.rel (%p261) target = $region48
      $region47: #{mlp_forward.1} parent=5 // pred_region
        %s265 = ssub.s32 %s16, 1
        %p266 = scmp.lt.s32.totalorder %s25, 1
        %s267 = scalar_select %p266, %s25, 1
        %p268 = scmp.lt.s32.totalorder %s26, 1
        %s269 = scalar_select %p268, %s26, 1
        %s270 = smul.addr %s269, 6
        %s271 = smul.addr %s267, 12
        %s272 = sadd.s32 %s270, %s271
        %s273 = smul.addr %s272, 4
        %s274 = scalar_lea.vmem %s0, %s273
        %p275 = pneg %p56
        %p276 = pneg %p53
        %p277 = pneg %p77
        %p278 = pneg %p74
        %p279 = pneg %p98
        %p280 = pneg %p95
        %p281 = pneg %p119
        %p282 = pneg %p116
        %p283 = pneg %p140
        %p284 = pneg %p137
        %p285 = pneg %p161
        %p286 = pneg %p158
        %p287 = pneg %p182
        %p288 = pneg %p179
        %p289 = pneg %p210
        %p290 = pneg %p207
        %s291 = sand.u32 %s197, 1
        %s292 = scalar_lea.sflag [#allocation4], %s291
        %s293 = sand.u32 %s197, 1
        %s294 = smul.addr %s293, 32
        %s295 = scalar_lea.vmem [#allocation3], %s294
        %p296 = scmp.lt.s32.totalorder %s25, 1
        %s297 = scalar_select %p296, %s25, 1
        %p298 = scmp.lt.s32.totalorder %s26, 1
        %s299 = scalar_select %p298, %s26, 1
        %s300 = smul.addr %s299, 6
        %s301 = smul.addr %s297, 12
        %s302 = sadd.s32 %s300, %s301
        %s303 = smul.addr %s302, 4
        %s304 = scalar_lea.vmem %s0, %s303
        %s305 = smul.u32 4, %s26
        %v307 = vld [vmem:[%s304] sm:$0xf]
        %v308 = vld [vmem:[%s304 + $0x4] sm:$0xf]
        %v309 = vld [vmem:[%s304 + $0x8] sm:$0xf]
        %v310 = vld [vmem:[%s304 + $0xc] sm:$0xf]
        %v311 = vld [vmem:[%s304 + $0x10] sm:$0xf]
        %v312 = vld [vmem:[%s304 + $0x14] sm:$0xf]
        %v313 = vld [vmem:[%s1] sm:$0xff]
        %v314 = vld [vmem:[%s1 + $0x8] sm:$0xff]
        %v315 = vld [vmem:[%s1 + $0x10] sm:$0xff]
        %v316 = vld [vmem:[%s1 + $0x18] sm:$0xff]
        %v317 = vld [vmem:[%s1 + $0x20] sm:$0xff]
        %v318 = vld [vmem:[%s1 + $0x28] sm:$0xff]
        %v319 = vld [vmem:[%s1 + $0x30] sm:$0xff]
        %v320 = vld [vmem:[%s1 + $0x38] sm:$0xff]
        %v321 = vld [vmem:[%s1 + $0x40] sm:$0xff]
        %v322 = vld [vmem:[%s1 + $0x48] sm:$0xff]
        %v323 = vld [vmem:[%s1 + $0x50] sm:$0xff]
        %v324 = vld [vmem:[%s1 + $0x58] sm:$0xff]
        %v325 = vld [vmem:[%s1 + $0x60] sm:$0xff]
        %v326 = vld [vmem:[%s1 + $0x68] sm:$0xff]
        %v327 = vld [vmem:[%s1 + $0x70] sm:$0xff]
        %v328 = vld [vmem:[%s1 + $0x78] sm:$0xff]
        %v329 = vld [vmem:[%s2] sm:$0x3]
        %v331 = vlaneseq
        %v332 = vshrl.u32 %v331, 7
        %v333 = vsub.s32 0, %v332
        %v334 = vrot.slane %v329, %v333
        %v335 = vlaneseq
        %v336 = vshrl.u32 %v335, 7
        %v337 = vsub.s32 1, %v336
        %v338 = vrot.slane %v329, %v337
        %v347 = vunpack.c.l.b16 %v307
        %v348 = vunpack.c.l.b16 %v308
        %v349 = vunpack.c.l.b16 %v309
        %v350 = vunpack.c.l.b16 %v310
        %v351 = vunpack.c.l.b16 %v311
        %v352 = vunpack.c.l.b16 %v312
        %v353 = vpack.c.b16 %v348, %v347
        %v354 = vpack.c.b16 %v350, %v349
        %v355 = vpack.c.b16 %v352, %v351
        %v375 = vunpack.c.l.b16 %v313
        %v376 = vunpack.c.h.b16 %v313
        %v377 = vunpack.c.l.b16 %v314
        %v378 = vunpack.c.h.b16 %v314
        %v379 = vunpack.c.l.b16 %v315
        %v380 = vunpack.c.h.b16 %v315
        %v381 = vunpack.c.l.b16 %v316
        %v382 = vunpack.c.h.b16 %v316
        %v383 = vunpack.c.l.b16 %v317
        %v384 = vunpack.c.h.b16 %v317
        %v385 = vunpack.c.l.b16 %v318
        %v386 = vunpack.c.h.b16 %v318
        %v387 = vunpack.c.l.b16 %v319
        %v388 = vunpack.c.h.b16 %v319
        %v389 = vunpack.c.l.b16 %v320
        %v390 = vunpack.c.h.b16 %v320
        %v391 = vunpack.c.l.b16 %v321
        %v392 = vunpack.c.h.b16 %v321
        %v393 = vunpack.c.l.b16 %v322
        %v394 = vunpack.c.h.b16 %v322
        %v395 = vunpack.c.l.b16 %v323
        %v396 = vunpack.c.h.b16 %v323
        %v397 = vunpack.c.l.b16 %v324
        %v398 = vunpack.c.h.b16 %v324
        %v399 = vunpack.c.l.b16 %v325
        %v400 = vunpack.c.h.b16 %v325
        %v401 = vunpack.c.l.b16 %v326
        %v402 = vunpack.c.h.b16 %v326
        %v403 = vunpack.c.l.b16 %v327
        %v404 = vunpack.c.h.b16 %v327
        %v405 = vunpack.c.l.b16 %v328
        %v406 = vunpack.c.h.b16 %v328
        %v407 = vpack.c.b16 %v377, %v375
        %v408 = vpack.c.b16 %v378, %v376
        %v409 = vpack.c.b16 %v381, %v379
        %v410 = vpack.c.b16 %v382, %v380
        %v411 = vpack.c.b16 %v385, %v383
        %v412 = vpack.c.b16 %v386, %v384
        %v413 = vpack.c.b16 %v389, %v387
        %v414 = vpack.c.b16 %v390, %v388
        %v415 = vpack.c.b16 %v393, %v391
        %v416 = vpack.c.b16 %v394, %v392
        %v417 = vpack.c.b16 %v397, %v395
        %v418 = vpack.c.b16 %v398, %v396
        %v419 = vpack.c.b16 %v401, %v399
        %v420 = vpack.c.b16 %v402, %v400
        %v421 = vpack.c.b16 %v405, %v403
        %v422 = vpack.c.b16 %v406, %v404
        %439 = vmatprep.subr.bf16.mxu0 %v408
        %440 = vmatpush1.bf16.msra.mxu0 %v407
        %441 = vmatprep.subr.bf16.mxu0 %v410
        %442 = vmatpush1.bf16.msra.mxu0 %v409
        %443 = vmatprep.subr.bf16.mxu0 %v412
        %444 = vmatpush1.bf16.msra.mxu0 %v411
        %445 = vmatprep.subr.bf16.mxu0 %v414
        %446 = vmatpush1.bf16.msra.mxu0 %v413
        %447 = vmatprep.subr.bf16.mxu0 %v416
        %448 = vmatpush1.bf16.msra.mxu0 %v415
        %449 = vmatprep.subr.bf16.mxu0 %v418
        %450 = vmatpush1.bf16.msra.mxu0 %v417
        %451 = vmatprep.subr.bf16.mxu0 %v420
        %452 = vmatpush1.bf16.msra.mxu0 %v419
        %453 = vmatprep.subr.bf16.mxu0 %v422
        %454 = vmatpush1.bf16.msra.mxu0 %v421
        %455 = vmatprep.subr.bf16.mxu0 0
        %456 = vmatpush1.bf16.msra.mxu0 0
        %457 = vmatprep.subr.bf16.mxu0 0
        %458 = vmatpush1.bf16.msra.mxu0 0
        %459 = vmatprep.subr.bf16.mxu0 0
        %460 = vmatpush1.bf16.msra.mxu0 0
        %461 = vmatprep.subr.bf16.mxu0 0
        %462 = vmatpush1.bf16.msra.mxu0 0
        %463 = vmatprep.subr.bf16.mxu0 0
        %464 = vmatpush1.bf16.msra.mxu0 0
        %465 = vmatprep.subr.bf16.mxu0 0
        %466 = vmatpush1.bf16.msra.mxu0 0
        %467 = vmatprep.subr.bf16.mxu0 0
        %468 = vmatpush1.bf16.msra.mxu0 0
        %469 = vmatprep.subr.bf16.mxu0 0
        %470 = vmatpush1.bf16.msra.mxu0 0
        %471 = vmatprep.mubr.bf16.mxu0 0
        %472 = vmatmul.mubr.bf16.gmra.mrb[0].mxu0 %v353
        %v473 = vpop.f32.mrb[0].mxu0
        %v474 = vadd.f32 %v334, %v473
        %v475 = vpop.f32.mrb[0].mxu0
        %v476 = vadd.f32 %v338, %v475
        %v477 = vpop.f32.mrb[0].mxu0
        %v478 = vadd.f32 %v334, %v477
        %v479 = vpop.f32.mrb[0].mxu0
        %v480 = vadd.f32 %v338, %v479
        %481 = vmatprep.mubr.bf16.mxu0 0
        %482 = vmatmul.mubr.bf16.gmra.mrb[0].mxu0 %v354
        %v483 = vpop.f32.mrb[0].mxu0
        %v484 = vadd.f32 %v334, %v483
        %v485 = vpop.f32.mrb[0].mxu0
        %v486 = vadd.f32 %v338, %v485
        %v487 = vpop.f32.mrb[0].mxu0
        %v488 = vadd.f32 %v334, %v487
        %v489 = vpop.f32.mrb[0].mxu0
        %v490 = vadd.f32 %v338, %v489
        %491 = vmatprep.mubr.bf16.mxu0 0
        %492 = vmatmul.mubr.bf16.gmra.mrb[0].mxu0 %v355
        %v493 = vpop.f32.mrb[0].mxu0
        %v494 = vadd.f32 %v334, %v493
        %v495 = vpop.f32.mrb[0].mxu0
        %v496 = vadd.f32 %v338, %v495
        %v497 = vpop.f32.mrb[0].mxu0
        %v498 = vadd.f32 %v334, %v497
        %v499 = vpop.f32.mrb[0].mxu0
        %v500 = vadd.f32 %v338, %v499
        %501 = vdwg.mxu0
        %502 = vst [vmem:[#allocation2] sm:$0xff] %v474
        %503 = vst [vmem:[#allocation2 + $0x8] sm:$0xff] %v476
        %504 = vst [vmem:[#allocation2 + $0x10] sm:$0xff] %v478
        %505 = vst [vmem:[#allocation2 + $0x18] sm:$0xff] %v480
        %506 = vst [vmem:[#allocation2 + $0x20] sm:$0xff] %v484
        %507 = vst [vmem:[#allocation2 + $0x28] sm:$0xff] %v486
        %508 = vst [vmem:[#allocation2 + $0x30] sm:$0xff] %v488
        %509 = vst [vmem:[#allocation2 + $0x38] sm:$0xff] %v490
        %510 = vst [vmem:[#allocation2 + $0x40] sm:$0xff] %v494
        %511 = vst [vmem:[#allocation2 + $0x48] sm:$0xff] %v496
        %512 = vst [vmem:[#allocation2 + $0x50] sm:$0xff] %v498
        %513 = vst [vmem:[#allocation2 + $0x58] sm:$0xff] %v500
        %p514 = scmp.eq.s32.totalorder %s26, 0
        // Predicated region
        $region49: #{mlp_forward.1} parent=47 // pred_check
          %p515 = pneg %p514
        $region50: #{mlp_forward.1} parent=47 // pred_check_branch
          %517 = sbr.rel (%p515) target = $region52
        $region51: #{mlp_forward.1} parent=47 // pred_region
          %518 = vst [vmem:[#allocation2] sm:$0xff] 0.0
          %519 = vst [vmem:[#allocation2 + $0x8] sm:$0xff] 0.0
        $region52: #{mlp_forward.1} parent=47 // pred_fallthru
          _
        %p520 = scmp.eq.s32.totalorder %s26, 1
        // Predicated region
        $region53: #{mlp_forward.1} parent=47 // pred_check
          %p521 = pneg %p520
        $region54: #{mlp_forward.1} parent=47 // pred_check_branch
          %523 = sbr.rel (%p521) target = $region56
        $region55: #{mlp_forward.1} parent=47 // pred_region
          %524 = vst [vmem:[#allocation2 + $0x50] sm:$0xff] 0.0
          %525 = vst [vmem:[#allocation2 + $0x58] sm:$0xff] 0.0
        $region56: #{mlp_forward.1} parent=47 // pred_fallthru
          _
        %v526 = vlaneseq
        %v527 = vshrl.u32 %v526, 7
        %v528 = vadd.s32 %v527, 8
        %v529 = vadd.s32 %v527, 16
        %v530 = vadd.s32 %v527, 24
        %vm531 = vcmp.lt.s32.totalorder %v527, 0
        %v532 = vsub.s32 0, %v527
        %v533 = vsel %vm531, %v532, %v527
        %v534 = vshrl.u32 %v533, 3
        %v535 = vand.u32 %v533, 7
        %v536 = vsub.s32 0, %v535
        %v537 = vsel %vm531, %v536, %v535
        %vm538 = vcmp.lt.s32.totalorder %v528, 0
        %v539 = vsub.s32 0, %v528
        %v540 = vsel %vm538, %v539, %v528
        %v541 = vshrl.u32 %v540, 3
        %v542 = vand.u32 %v540, 7
        %v543 = vsub.s32 0, %v542
        %v544 = vsel %vm538, %v543, %v542
        %vm545 = vcmp.lt.s32.totalorder %v529, 0
        %v546 = vsub.s32 0, %v529
        %v547 = vsel %vm545, %v546, %v529
        %v548 = vshrl.u32 %v547, 3
        %v549 = vand.u32 %v547, 7
        %v550 = vsub.s32 0, %v549
        %v551 = vsel %vm545, %v550, %v549
        %vm552 = vcmp.lt.s32.totalorder %v530, 0
        %v553 = vsub.s32 0, %v530
        %v554 = vsel %vm552, %v553, %v530
        %v555 = vshrl.u32 %v554, 3
        %v556 = vand.u32 %v554, 7
        %v557 = vsub.s32 0, %v556
        %v558 = vsel %vm552, %v557, %v556
        %vm559 = vcmp.ne.s32.totalorder %v537, 0
        %vm560 = vcmp.ne.s32.totalorder %v544, 0
        %vm561 = vcmp.ne.s32.totalorder %v551, 0
        %vm562 = vcmp.ne.s32.totalorder %v558, 0
        %vm563 = vcmp.lt.s32.totalorder %v537, 0
        %vm564 = vcmp.lt.s32.totalorder %v544, 0
        %vm565 = vcmp.lt.s32.totalorder %v551, 0
        %vm566 = vcmp.lt.s32.totalorder %v558, 0
        %vm567 = vmand %vm563, %vm559
        %vm568 = vmand %vm564, %vm560
        %vm569 = vmand %vm565, %vm561
        %vm570 = vmand %vm566, %vm562
        %v571 = vadd.s32 %v537, 8
        %v572 = vadd.s32 %v544, 8
        %v573 = vadd.s32 %v551, 8
        %v574 = vadd.s32 %v558, 8
        %v575 = vsel %vm567, %v571, %v537
        %v576 = vsel %vm568, %v572, %v544
        %v577 = vsel %vm569, %v573, %v551
        %v578 = vsel %vm570, %v574, %v558
        %vm579 = vcmp.ne.s32.totalorder %v575, 0
        %vm580 = vcmp.ne.s32.totalorder %v576, 0
        %vm581 = vcmp.ne.s32.totalorder %v577, 0
        %vm582 = vcmp.ne.s32.totalorder %v578, 0
        %vm583 = vcmp.ne.s32.totalorder %v575, 7
        %vm584 = vcmp.ne.s32.totalorder %v576, 7
        %vm585 = vcmp.ne.s32.totalorder %v577, 7
        %vm586 = vcmp.ne.s32.totalorder %v578, 7
        %v587 = vld [vmem:[%s3] sm:$0xff]
        %v588 = vld [vmem:[%s3 + $0x8] sm:$0xff]
        %v589 = vld [vmem:[%s3 + $0x10] sm:$0x1]
        %v590 = vld [vmem:[%s3 + $0x18] sm:$0x1]
        %v591 = vld [vmem:[#allocation2] sm:$0xff]
        %v592 = vld [vmem:[#allocation2 + $0x8] sm:$0xff]
        %v593 = vld [vmem:[#allocation2 + $0x10] sm:$0xff]
        %v594 = vld [vmem:[#allocation2 + $0x18] sm:$0xff]
        %v595 = vld [vmem:[#allocation2 + $0x20] sm:$0xff]
        %v596 = vld [vmem:[#allocation2 + $0x28] sm:$0xff]
        %v597 = vld [vmem:[#allocation2 + $0x30] sm:$0xff]
        %v598 = vld [vmem:[#allocation2 + $0x38] sm:$0xff]
        %v599 = vlaneseq
        %v600 = vshrl.u32 %v599, 7
        %v601 = vsub.s32 1, %v600
        %v602 = vrot.slane %v587, %v601
        %v603 = vlaneseq
        %v604 = vshrl.u32 %v603, 7
        %v605 = vsub.s32 1, %v604
        %v606 = vrot.slane %v588, %v605
        %v607 = vmul.f32 %v591, %v602
        %v608 = vmul.f32 %v592, %v606
        %v609 = vmul.f32 %v593, %v602
        %v610 = vmul.f32 %v594, %v606
        %v611 = vmul.f32 %v595, %v602
        %v612 = vmul.f32 %v596, %v606
        %v613 = vmul.f32 %v597, %v602
        %v614 = vmul.f32 %v598, %v606
        %v615 = vadd.f32 %v607, 0.0
        %v616 = vadd.f32 %v608, 0.0
        %v617 = vadd.f32 %v609, 0.0
        %v618 = vadd.f32 %v610, 0.0
        %v619 = vadd.f32 %v611, 0.0
        %v620 = vadd.f32 %v612, 0.0
        %v621 = vadd.f32 %v613, 0.0
        %v622 = vadd.f32 %v614, 0.0
        %v623 = vrot.slane %v591, 7
        %v624 = vrot.slane %v592, 7
        %v625 = vrot.slane %v593, 7
        %v626 = vrot.slane %v594, 7
        %v627 = vrot.slane %v595, 7
        %v628 = vrot.slane %v596, 7
        %v629 = vrot.slane %v597, 7
        %v630 = vrot.slane %v598, 7
        %vm631 = vcmp.lt.s32.totalorder %v527, 1
        %v632 = vsel %vm631, %v627, %v629
        %v633 = vsel %vm631, %v628, %v630
        %v634 = vsel %vm631, %v625, %v627
        %v635 = vsel %vm631, %v626, %v628
        %v636 = vsel %vm631, %v623, %v625
        %v637 = vsel %vm631, %v624, %v626
        %v638 = vsel %vm631, %v629, %v623
        %v639 = vsel %vm631, %v630, %v624
        %v640 = vsel %vm579, 1, 0
        %v641 = vsel %vm580, 1, 0
        %v642 = vsel %vm581, 1, 0
        %v643 = vsel %vm582, 1, 0
        %vm644 = vcmp.eq.s32.totalorder %v640, 1
        %vm645 = vcmp.eq.s32.totalorder %v641, 1
        %vm646 = vcmp.eq.s32.totalorder %v642, 1
        %vm647 = vcmp.eq.s32.totalorder %v643, 1
        %v648 = vsel %vm644, %v638, 0.0
        %v649 = vsel %vm644, %v639, 0.0
        %v650 = vsel %vm645, %v636, 0.0
        %v651 = vsel %vm645, %v637, 0.0
        %v652 = vsel %vm646, %v634, 0.0
        %v653 = vsel %vm646, %v635, 0.0
        %v654 = vsel %vm647, %v632, 0.0
        %v655 = vsel %vm647, %v633, 0.0
        %v656 = vlaneseq
        %v657 = vshrl.u32 %v656, 7
        %v658 = vsub.s32 0, %v657
        %v659 = vrot.slane %v587, %v658
        %v660 = vlaneseq
        %v661 = vshrl.u32 %v660, 7
        %v662 = vsub.s32 0, %v661
        %v663 = vrot.slane %v588, %v662
        %v664 = vmul.f32 %v648, %v659
        %v665 = vmul.f32 %v649, %v663
        %v666 = vmul.f32 %v650, %v659
        %v667 = vmul.f32 %v651, %v663
        %v668 = vmul.f32 %v652, %v659
        %v669 = vmul.f32 %v653, %v663
        %v670 = vmul.f32 %v654, %v659
        %v671 = vmul.f32 %v655, %v663
        %v672 = vadd.f32 %v615, %v664
        %v673 = vadd.f32 %v616, %v665
        %v674 = vadd.f32 %v617, %v666
        %v675 = vadd.f32 %v618, %v667
        %v676 = vadd.f32 %v619, %v668
        %v677 = vadd.f32 %v620, %v669
        %v678 = vadd.f32 %v621, %v670
        %v679 = vadd.f32 %v622, %v671
        %v680 = vrot.slane %v591, 1
        %v681 = vrot.slane %v592, 1
        %v682 = vrot.slane %v593, 1
        %v683 = vrot.slane %v594, 1
        %v684 = vrot.slane %v595, 1
        %v685 = vrot.slane %v596, 1
        %v686 = vrot.slane %v597, 1
        %v687 = vrot.slane %v598, 1
        %vm688 = vcmp.lt.s32.totalorder %v527, 7
        %v689 = vsel %vm688, %v684, %v686
        %v690 = vsel %vm688, %v685, %v687
        %v691 = vsel %vm688, %v682, %v684
        %v692 = vsel %vm688, %v683, %v685
        %v693 = vsel %vm688, %v680, %v682
        %v694 = vsel %vm688, %v681, %v683
        %v695 = vsel %vm688, %v686, %v680
        %v696 = vsel %vm688, %v687, %v681
        %v697 = vsel %vm583, 1, 0
        %v698 = vsel %vm584, 1, 0
        %v699 = vsel %vm585, 1, 0
        %v700 = vsel %vm586, 1, 0
        %vm701 = vcmp.eq.s32.totalorder %v697, 1
        %vm702 = vcmp.eq.s32.totalorder %v698, 1
        %vm703 = vcmp.eq.s32.totalorder %v699, 1
        %vm704 = vcmp.eq.s32.totalorder %v700, 1
        %v705 = vsel %vm701, %v693, 0.0
        %v706 = vsel %vm701, %v694, 0.0
        %v707 = vsel %vm702, %v691, 0.0
        %v708 = vsel %vm702, %v692, 0.0
        %v709 = vsel %vm703, %v689, 0.0
        %v710 = vsel %vm703, %v690, 0.0
        %v711 = vsel %vm704, %v695, 0.0
        %v712 = vsel %vm704, %v696, 0.0
        %v713 = vlaneseq
        %v714 = vshrl.u32 %v713, 7
        %v715 = vsub.s32 2, %v714
        %v716 = vrot.slane %v587, %v715
        %v717 = vlaneseq
        %v718 = vshrl.u32 %v717, 7
        %v719 = vsub.s32 2, %v718
        %v720 = vrot.slane %v588, %v719
        %v721 = vmul.f32 %v705, %v716
        %v722 = vmul.f32 %v706, %v720
        %v723 = vmul.f32 %v707, %v716
        %v724 = vmul.f32 %v708, %v720
        %v725 = vmul.f32 %v709, %v716
        %v726 = vmul.f32 %v710, %v720
        %v727 = vmul.f32 %v711, %v716
        %v728 = vmul.f32 %v712, %v720
        %v729 = vadd.f32 %v672, %v721
        %v730 = vadd.f32 %v673, %v722
        %v731 = vadd.f32 %v674, %v723
        %v732 = vadd.f32 %v675, %v724
        %v733 = vadd.f32 %v676, %v725
        %v734 = vadd.f32 %v677, %v726
        %v735 = vadd.f32 %v678, %v727
        %v736 = vadd.f32 %v679, %v728
        %v737 = vld [vmem:[#allocation2 + $0x40] sm:$0xff]
        %v738 = vld [vmem:[#allocation2 + $0x48] sm:$0xff]
        %v739 = vlaneseq
        %v740 = vshrl.u32 %v739, 7
        %v741 = vsub.s32 4, %v740
        %v742 = vrot.slane %v587, %v741
        %v743 = vlaneseq
        %v744 = vshrl.u32 %v743, 7
        %v745 = vsub.s32 4, %v744
        %v746 = vrot.slane %v588, %v745
        %v747 = vmul.f32 %v593, %v742
        %v748 = vmul.f32 %v594, %v746
        %v749 = vmul.f32 %v595, %v742
        %v750 = vmul.f32 %v596, %v746
        %v751 = vmul.f32 %v597, %v742
        %v752 = vmul.f32 %v598, %v746
        %v753 = vmul.f32 %v737, %v742
        %v754 = vmul.f32 %v738, %v746
        %v755 = vadd.f32 %v729, %v747
        %v756 = vadd.f32 %v730, %v748
        %v757 = vadd.f32 %v731, %v749
        %v758 = vadd.f32 %v732, %v750
        %v759 = vadd.f32 %v733, %v751
        %v760 = vadd.f32 %v734, %v752
        %v761 = vadd.f32 %v735, %v753
        %v762 = vadd.f32 %v736, %v754
        %v763 = vrot.slane %v737, 7
        %v764 = vrot.slane %v738, 7
        %v765 = vsel %vm631, %v629, %v763
        %v766 = vsel %vm631, %v630, %v764
        %v767 = vsel %vm631, %v763, %v625
        %v768 = vsel %vm631, %v764, %v626
        %v769 = vsel %vm644, %v767, 0.0
        %v770 = vsel %vm644, %v768, 0.0
        %v771 = vsel %vm645, %v634, 0.0
        %v772 = vsel %vm645, %v635, 0.0
        %v773 = vsel %vm646, %v632, 0.0
        %v774 = vsel %vm646, %v633, 0.0
        %v775 = vsel %vm647, %v765, 0.0
        %v776 = vsel %vm647, %v766, 0.0
        %v777 = vlaneseq
        %v778 = vshrl.u32 %v777, 7
        %v779 = vsub.s32 3, %v778
        %v780 = vrot.slane %v587, %v779
        %v781 = vlaneseq
        %v782 = vshrl.u32 %v781, 7
        %v783 = vsub.s32 3, %v782
        %v784 = vrot.slane %v588, %v783
        %v785 = vmul.f32 %v769, %v780
        %v786 = vmul.f32 %v770, %v784
        %v787 = vmul.f32 %v771, %v780
        %v788 = vmul.f32 %v772, %v784
        %v789 = vmul.f32 %v773, %v780
        %v790 = vmul.f32 %v774, %v784
        %v791 = vmul.f32 %v775, %v780
        %v792 = vmul.f32 %v776, %v784
        %v793 = vadd.f32 %v755, %v785
        %v794 = vadd.f32 %v756, %v786
        %v795 = vadd.f32 %v757, %v787
        %v796 = vadd.f32 %v758, %v788
        %v797 = vadd.f32 %v759, %v789
        %v798 = vadd.f32 %v760, %v790
        %v799 = vadd.f32 %v761, %v791
        %v800 = vadd.f32 %v762, %v792
        %v801 = vrot.slane %v737, 1
        %v802 = vrot.slane %v738, 1
        %v803 = vsel %vm688, %v686, %v801
        %v804 = vsel %vm688, %v687, %v802
        %v805 = vsel %vm688, %v801, %v682
        %v806 = vsel %vm688, %v802, %v683
        %v807 = vsel %vm701, %v691, 0.0
        %v808 = vsel %vm701, %v692, 0.0
        %v809 = vsel %vm702, %v689, 0.0
        %v810 = vsel %vm702, %v690, 0.0
        %v811 = vsel %vm703, %v803, 0.0
        %v812 = vsel %vm703, %v804, 0.0
        %v813 = vsel %vm704, %v805, 0.0
        %v814 = vsel %vm704, %v806, 0.0
        %v815 = vlaneseq
        %v816 = vshrl.u32 %v815, 7
        %v817 = vsub.s32 5, %v816
        %v818 = vrot.slane %v587, %v817
        %v819 = vlaneseq
        %v820 = vshrl.u32 %v819, 7
        %v821 = vsub.s32 5, %v820
        %v822 = vrot.slane %v588, %v821
        %v823 = vmul.f32 %v807, %v818
        %v824 = vmul.f32 %v808, %v822
        %v825 = vmul.f32 %v809, %v818
        %v826 = vmul.f32 %v810, %v822
        %v827 = vmul.f32 %v811, %v818
        %v828 = vmul.f32 %v812, %v822
        %v829 = vmul.f32 %v813, %v818
        %v830 = vmul.f32 %v814, %v822
        %v831 = vadd.f32 %v793, %v823
        %v832 = vadd.f32 %v794, %v824
        %v833 = vadd.f32 %v795, %v825
        %v834 = vadd.f32 %v796, %v826
        %v835 = vadd.f32 %v797, %v827
        %v836 = vadd.f32 %v798, %v828
        %v837 = vadd.f32 %v799, %v829
        %v838 = vadd.f32 %v800, %v830
        %v839 = vld [vmem:[#allocation2 + $0x20] sm:$0xff]
        %v840 = vld [vmem:[#allocation2 + $0x28] sm:$0xff]
        %v841 = vld [vmem:[#allocation2 + $0x30] sm:$0xff]
        %v842 = vld [vmem:[#allocation2 + $0x38] sm:$0xff]
        %v843 = vld [vmem:[#allocation2 + $0x40] sm:$0xff]
        %v844 = vld [vmem:[#allocation2 + $0x48] sm:$0xff]
        %v845 = vld [vmem:[#allocation2 + $0x50] sm:$0xff]
        %v846 = vld [vmem:[#allocation2 + $0x58] sm:$0xff]
        %v847 = vlaneseq
        %v848 = vshrl.u32 %v847, 7
        %v849 = vsub.s32 7, %v848
        %v850 = vrot.slane %v587, %v849
        %v851 = vlaneseq
        %v852 = vshrl.u32 %v851, 7
        %v853 = vsub.s32 7, %v852
        %v854 = vrot.slane %v588, %v853
        %v855 = vmul.f32 %v839, %v850
        %v856 = vmul.f32 %v840, %v854
        %v857 = vmul.f32 %v841, %v850
        %v858 = vmul.f32 %v842, %v854
        %v859 = vmul.f32 %v843, %v850
        %v860 = vmul.f32 %v844, %v854
        %v861 = vmul.f32 %v845, %v850
        %v862 = vmul.f32 %v846, %v854
        %v863 = vadd.f32 %v831, %v855
        %v864 = vadd.f32 %v832, %v856
        %v865 = vadd.f32 %v833, %v857
        %v866 = vadd.f32 %v834, %v858
        %v867 = vadd.f32 %v835, %v859
        %v868 = vadd.f32 %v836, %v860
        %v869 = vadd.f32 %v837, %v861
        %v870 = vadd.f32 %v838, %v862
        %v871 = vrot.slane %v839, 7
        %v872 = vrot.slane %v840, 7
        %v873 = vrot.slane %v841, 7
        %v874 = vrot.slane %v842, 7
        %v875 = vrot.slane %v843, 7
        %v876 = vrot.slane %v844, 7
        %v877 = vrot.slane %v845, 7
        %v878 = vrot.slane %v846, 7
        %v879 = vsel %vm631, %v875, %v877
        %v880 = vsel %vm631, %v876, %v878
        %v881 = vsel %vm631, %v873, %v875
        %v882 = vsel %vm631, %v874, %v876
        %v883 = vsel %vm631, %v871, %v873
        %v884 = vsel %vm631, %v872, %v874
        %v885 = vsel %vm631, %v877, %v871
        %v886 = vsel %vm631, %v878, %v872
        %v887 = vsel %vm644, %v885, 0.0
        %v888 = vsel %vm644, %v886, 0.0
        %v889 = vsel %vm645, %v883, 0.0
        %v890 = vsel %vm645, %v884, 0.0
        %v891 = vsel %vm646, %v881, 0.0
        %v892 = vsel %vm646, %v882, 0.0
        %v893 = vsel %vm647, %v879, 0.0
        %v894 = vsel %vm647, %v880, 0.0
        %v895 = vlaneseq
        %v896 = vshrl.u32 %v895, 7
        %v897 = vsub.s32 6, %v896
        %v898 = vrot.slane %v587, %v897
        %v899 = vlaneseq
        %v900 = vshrl.u32 %v899, 7
        %v901 = vsub.s32 6, %v900
        %v902 = vrot.slane %v588, %v901
        %v903 = vmul.f32 %v887, %v898
        %v904 = vmul.f32 %v888, %v902
        %v905 = vmul.f32 %v889, %v898
        %v906 = vmul.f32 %v890, %v902
        %v907 = vmul.f32 %v891, %v898
        %v908 = vmul.f32 %v892, %v902
        %v909 = vmul.f32 %v893, %v898
        %v910 = vmul.f32 %v894, %v902
        %v911 = vadd.f32 %v863, %v903
        %v912 = vadd.f32 %v864, %v904
        %v913 = vadd.f32 %v865, %v905
        %v914 = vadd.f32 %v866, %v906
        %v915 = vadd.f32 %v867, %v907
        %v916 = vadd.f32 %v868, %v908
        %v917 = vadd.f32 %v869, %v909
        %v918 = vadd.f32 %v870, %v910
        %v919 = vrot.slane %v839, 1
        %v920 = vrot.slane %v840, 1
        %v921 = vrot.slane %v841, 1
        %v922 = vrot.slane %v842, 1
        %v923 = vrot.slane %v843, 1
        %v924 = vrot.slane %v844, 1
        %v925 = vrot.slane %v845, 1
        %v926 = vrot.slane %v846, 1
        %v927 = vsel %vm688, %v923, %v925
        %v928 = vsel %vm688, %v924, %v926
        %v929 = vsel %vm688, %v921, %v923
        %v930 = vsel %vm688, %v922, %v924
        %v931 = vsel %vm688, %v919, %v921
        %v932 = vsel %vm688, %v920, %v922
        %v933 = vsel %vm688, %v925, %v919
        %v934 = vsel %vm688, %v926, %v920
        %v935 = vsel %vm701, %v931, 0.0
        %v936 = vsel %vm701, %v932, 0.0
        %v937 = vsel %vm702, %v929, 0.0
        %v938 = vsel %vm702, %v930, 0.0
        %v939 = vsel %vm703, %v927, 0.0
        %v940 = vsel %vm703, %v928, 0.0
        %v941 = vsel %vm704, %v933, 0.0
        %v942 = vsel %vm704, %v934, 0.0
        %v943 = vlaneseq
        %v944 = vshrl.u32 %v943, 7
        %v945 = vsub.s32 0, %v944
        %v946 = vrot.slane %v589, %v945
        %v947 = vlaneseq
        %v948 = vshrl.u32 %v947, 7
        %v949 = vsub.s32 0, %v948
        %v950 = vrot.slane %v590, %v949
        %v951 = vmul.f32 %v935, %v946
        %v952 = vmul.f32 %v936, %v950
        %v953 = vmul.f32 %v937, %v946
        %v954 = vmul.f32 %v938, %v950
        %v955 = vmul.f32 %v939, %v946
        %v956 = vmul.f32 %v940, %v950
        %v957 = vmul.f32 %v941, %v946
        %v958 = vmul.f32 %v942, %v950
        %v959 = vadd.f32 %v911, %v951
        %v960 = vadd.f32 %v912, %v952
        %v961 = vadd.f32 %v913, %v953
        %v962 = vadd.f32 %v914, %v954
        %v963 = vadd.f32 %v915, %v955
        %v964 = vadd.f32 %v916, %v956
        %v965 = vadd.f32 %v917, %v957
        %v966 = vadd.f32 %v918, %v958
        %v967 = vld [vmem:[%s4] sm:$0x3]
        %v969 = vlaneseq
        %v970 = vshrl.u32 %v969, 7
        %v971 = vsub.s32 0, %v970
        %v972 = vrot.slane %v967, %v971
        %v973 = vlaneseq
        %v974 = vshrl.u32 %v973, 7
        %v975 = vsub.s32 1, %v974
        %v976 = vrot.slane %v967, %v975
        %v979 = vadd.f32 %v959, %v972
        %v980 = vadd.f32 %v960, %v976
        %v981 = vadd.f32 %v961, %v972
        %v982 = vadd.f32 %v962, %v976
        %v983 = vadd.f32 %v963, %v972
        %v984 = vadd.f32 %v964, %v976
        %v985 = vadd.f32 %v965, %v972
        %v986 = vadd.f32 %v966, %v976
        %v987 = vmul.f32 %v979, 0.5
        %v988 = vmul.f32 %v980, 0.5
        %v989 = vmul.f32 %v981, 0.5
        %v990 = vmul.f32 %v982, 0.5
        %v991 = vmul.f32 %v983, 0.5
        %v992 = vmul.f32 %v984, 0.5
        %v993 = vmul.f32 %v985, 0.5
        %v994 = vmul.f32 %v986, 0.5
        %v995 = vmul.f32 %v979, 0.70710677
        %v996 = vmul.f32 %v980, 0.70710677
        %v997 = vmul.f32 %v981, 0.70710677
        %v998 = vmul.f32 %v982, 0.70710677
        %v999 = vmul.f32 %v983, 0.70710677
        %v1000 = vmul.f32 %v984, 0.70710677
        %v1001 = vmul.f32 %v985, 0.70710677
        %v1002 = vmul.f32 %v986, 0.70710677
        %vm1003 = vcmp.lt.f32.partialorder %v995, 0.0
        %vm1004 = vcmp.lt.f32.partialorder %v996, 0.0
        %vm1005 = vcmp.lt.f32.partialorder %v997, 0.0
        %vm1006 = vcmp.lt.f32.partialorder %v998, 0.0
        %vm1007 = vcmp.lt.f32.partialorder %v999, 0.0
        %vm1008 = vcmp.lt.f32.partialorder %v1000, 0.0
        %vm1009 = vcmp.lt.f32.partialorder %v1001, 0.0
        %vm1010 = vcmp.lt.f32.partialorder %v1002, 0.0
        %v1011 = vsub.f32 0.0, %v995
        %v1012 = vsub.f32 0.0, %v996
        %v1013 = vsub.f32 0.0, %v997
        %v1014 = vsub.f32 0.0, %v998
        %v1015 = vsub.f32 0.0, %v999
        %v1016 = vsub.f32 0.0, %v1000
        %v1017 = vsub.f32 0.0, %v1001
        %v1018 = vsub.f32 0.0, %v1002
        %v1019 = vsel %vm1003, %v1011, %v995
        %v1020 = vsel %vm1004, %v1012, %v996
        %v1021 = vsel %vm1005, %v1013, %v997
        %v1022 = vsel %vm1006, %v1014, %v998
        %v1023 = vsel %vm1007, %v1015, %v999
        %v1024 = vsel %vm1008, %v1016, %v1000
        %v1025 = vsel %vm1009, %v1017, %v1001
        %v1026 = vsel %vm1010, %v1018, %v1002
        %v1027 = vmul.f32 %v1019, 0.3275911
        %v1028 = vmul.f32 %v1020, 0.3275911
        %v1029 = vmul.f32 %v1021, 0.3275911
        %v1030 = vmul.f32 %v1022, 0.3275911
        %v1031 = vmul.f32 %v1023, 0.3275911
        %v1032 = vmul.f32 %v1024, 0.3275911
        %v1033 = vmul.f32 %v1025, 0.3275911
        %v1034 = vmul.f32 %v1026, 0.3275911
        %v1035 = vadd.f32 %v1027, 1.0
        %v1036 = vadd.f32 %v1028, 1.0
        %v1037 = vadd.f32 %v1029, 1.0
        %v1038 = vadd.f32 %v1030, 1.0
        %v1039 = vadd.f32 %v1031, 1.0
        %v1040 = vadd.f32 %v1032, 1.0
        %v1041 = vadd.f32 %v1033, 1.0
        %v1042 = vadd.f32 %v1034, 1.0
        %v1043 = vrcp.pop %v1035
        %v1044 = vmul.f32 1.0, %v1043
        %v1045 = vrcp.pop %v1036
        %v1046 = vmul.f32 1.0, %v1045
        %v1047 = vrcp.pop %v1037
        %v1048 = vmul.f32 1.0, %v1047
        %v1049 = vrcp.pop %v1038
        %v1050 = vmul.f32 1.0, %v1049
        %v1051 = vrcp.pop %v1039
        %v1052 = vmul.f32 1.0, %v1051
        %v1053 = vrcp.pop %v1040
        %v1054 = vmul.f32 1.0, %v1053
        %v1055 = vrcp.pop %v1041
        %v1056 = vmul.f32 1.0, %v1055
        %v1057 = vrcp.pop %v1042
        %v1058 = vmul.f32 1.0, %v1057
        %v1059 = vmul.f32 %v1044, 1.0614054
        %v1060 = vmul.f32 %v1046, 1.0614054
        %v1061 = vmul.f32 %v1048, 1.0614054
        %v1062 = vmul.f32 %v1050, 1.0614054
        %v1063 = vmul.f32 %v1052, 1.0614054
        %v1064 = vmul.f32 %v1054, 1.0614054
        %v1065 = vmul.f32 %v1056, 1.0614054
        %v1066 = vmul.f32 %v1058, 1.0614054
        %v1067 = vadd.f32 %v1059, -1.4531521
        %v1068 = vadd.f32 %v1060, -1.4531521
        %v1069 = vadd.f32 %v1061, -1.4531521
        %v1070 = vadd.f32 %v1062, -1.4531521
        %v1071 = vadd.f32 %v1063, -1.4531521
        %v1072 = vadd.f32 %v1064, -1.4531521
        %v1073 = vadd.f32 %v1065, -1.4531521
        %v1074 = vadd.f32 %v1066, -1.4531521
        %v1075 = vmul.f32 %v1044, %v1067
        %v1076 = vmul.f32 %v1046, %v1068
        %v1077 = vmul.f32 %v1048, %v1069
        %v1078 = vmul.f32 %v1050, %v1070
        %v1079 = vmul.f32 %v1052, %v1071
        %v1080 = vmul.f32 %v1054, %v1072
        %v1081 = vmul.f32 %v1056, %v1073
        %v1082 = vmul.f32 %v1058, %v1074
        %v1083 = vadd.f32 %v1075, 1.4214138
        %v1084 = vadd.f32 %v1076, 1.4214138
        %v1085 = vadd.f32 %v1077, 1.4214138
        %v1086 = vadd.f32 %v1078, 1.4214138
        %v1087 = vadd.f32 %v1079, 1.4214138
        %v1088 = vadd.f32 %v1080, 1.4214138
        %v1089 = vadd.f32 %v1081, 1.4214138
        %v1090 = vadd.f32 %v1082, 1.4214138
        %v1091 = vmul.f32 %v1044, %v1083
        %v1092 = vmul.f32 %v1046, %v1084
        %v1093 = vmul.f32 %v1048, %v1085
        %v1094 = vmul.f32 %v1050, %v1086
        %v1095 = vmul.f32 %v1052, %v1087
        %v1096 = vmul.f32 %v1054, %v1088
        %v1097 = vmul.f32 %v1056, %v1089
        %v1098 = vmul.f32 %v1058, %v1090
        %v1099 = vadd.f32 %v1091, -0.28449672
        %v1100 = vadd.f32 %v1092, -0.28449672
        %v1101 = vadd.f32 %v1093, -0.28449672
        %v1102 = vadd.f32 %v1094, -0.28449672
        %v1103 = vadd.f32 %v1095, -0.28449672
        %v1104 = vadd.f32 %v1096, -0.28449672
        %v1105 = vadd.f32 %v1097, -0.28449672
        %v1106 = vadd.f32 %v1098, -0.28449672
        %v1107 = vmul.f32 %v1044, %v1099
        %v1108 = vmul.f32 %v1046, %v1100
        %v1109 = vmul.f32 %v1048, %v1101
        %v1110 = vmul.f32 %v1050, %v1102
        %v1111 = vmul.f32 %v1052, %v1103
        %v1112 = vmul.f32 %v1054, %v1104
        %v1113 = vmul.f32 %v1056, %v1105
        %v1114 = vmul.f32 %v1058, %v1106
        %v1115 = vadd.f32 %v1107, 0.2548296
        %v1116 = vadd.f32 %v1108, 0.2548296
        %v1117 = vadd.f32 %v1109, 0.2548296
        %v1118 = vadd.f32 %v1110, 0.2548296
        %v1119 = vadd.f32 %v1111, 0.2548296
        %v1120 = vadd.f32 %v1112, 0.2548296
        %v1121 = vadd.f32 %v1113, 0.2548296
        %v1122 = vadd.f32 %v1114, 0.2548296
        %v1123 = vmul.f32 %v1044, %v1115
        %v1124 = vmul.f32 %v1046, %v1116
        %v1125 = vmul.f32 %v1048, %v1117
        %v1126 = vmul.f32 %v1050, %v1118
        %v1127 = vmul.f32 %v1052, %v1119
        %v1128 = vmul.f32 %v1054, %v1120
        %v1129 = vmul.f32 %v1056, %v1121
        %v1130 = vmul.f32 %v1058, %v1122
        %v1131 = vsub.f32 0.0, %v1019
        %v1132 = vsub.f32 0.0, %v1020
        %v1133 = vsub.f32 0.0, %v1021
        %v1134 = vsub.f32 0.0, %v1022
        %v1135 = vsub.f32 0.0, %v1023
        %v1136 = vsub.f32 0.0, %v1024
        %v1137 = vsub.f32 0.0, %v1025
        %v1138 = vsub.f32 0.0, %v1026
        %v1139 = vmul.f32 %v1131, %v1019
        %v1140 = vmul.f32 %v1132, %v1020
        %v1141 = vmul.f32 %v1133, %v1021
        %v1142 = vmul.f32 %v1134, %v1022
        %v1143 = vmul.f32 %v1135, %v1023
        %v1144 = vmul.f32 %v1136, %v1024
        %v1145 = vmul.f32 %v1137, %v1025
        %v1146 = vmul.f32 %v1138, %v1026
        %v1147 = vmul.f32 %v1139, 1.442695
        %v1148 = vpow.pop %v1147
        %v1149 = vmul.f32 %v1140, 1.442695
        %v1150 = vpow.pop %v1149
        %v1151 = vmul.f32 %v1141, 1.442695
        %v1152 = vpow.pop %v1151
        %v1153 = vmul.f32 %v1142, 1.442695
        %v1154 = vpow.pop %v1153
        %v1155 = vmul.f32 %v1143, 1.442695
        %v1156 = vpow.pop %v1155
        %v1157 = vmul.f32 %v1144, 1.442695
        %v1158 = vpow.pop %v1157
        %v1159 = vmul.f32 %v1145, 1.442695
        %v1160 = vpow.pop %v1159
        %v1161 = vmul.f32 %v1146, 1.442695
        %v1162 = vpow.pop %v1161
        %v1163 = vmul.f32 %v1123, %v1148
        %v1164 = vmul.f32 %v1124, %v1150
        %v1165 = vmul.f32 %v1125, %v1152
        %v1166 = vmul.f32 %v1126, %v1154
        %v1167 = vmul.f32 %v1127, %v1156
        %v1168 = vmul.f32 %v1128, %v1158
        %v1169 = vmul.f32 %v1129, %v1160
        %v1170 = vmul.f32 %v1130, %v1162
        %v1171 = vsub.f32 1.0, %v1163
        %v1172 = vsub.f32 1.0, %v1164
        %v1173 = vsub.f32 1.0, %v1165
        %v1174 = vsub.f32 1.0, %v1166
        %v1175 = vsub.f32 1.0, %v1167
        %v1176 = vsub.f32 1.0, %v1168
        %v1177 = vsub.f32 1.0, %v1169
        %v1178 = vsub.f32 1.0, %v1170
        %v1179 = vsub.f32 0.0, %v1171
        %v1180 = vsub.f32 0.0, %v1172
        %v1181 = vsub.f32 0.0, %v1173
        %v1182 = vsub.f32 0.0, %v1174
        %v1183 = vsub.f32 0.0, %v1175
        %v1184 = vsub.f32 0.0, %v1176
        %v1185 = vsub.f32 0.0, %v1177
        %v1186 = vsub.f32 0.0, %v1178
        %v1187 = vsel %vm1003, %v1179, %v1171
        %v1188 = vsel %vm1004, %v1180, %v1172
        %v1189 = vsel %vm1005, %v1181, %v1173
        %v1190 = vsel %vm1006, %v1182, %v1174
        %v1191 = vsel %vm1007, %v1183, %v1175
        %v1192 = vsel %vm1008, %v1184, %v1176
        %v1193 = vsel %vm1009, %v1185, %v1177
        %v1194 = vsel %vm1010, %v1186, %v1178
        %v1195 = vadd.f32 %v1187, 1.0
        %v1196 = vadd.f32 %v1188, 1.0
        %v1197 = vadd.f32 %v1189, 1.0
        %v1198 = vadd.f32 %v1190, 1.0
        %v1199 = vadd.f32 %v1191, 1.0
        %v1200 = vadd.f32 %v1192, 1.0
        %v1201 = vadd.f32 %v1193, 1.0
        %v1202 = vadd.f32 %v1194, 1.0
        %v1203 = vmul.f32 %v987, %v1195
        %v1204 = vmul.f32 %v988, %v1196
        %v1205 = vmul.f32 %v989, %v1197
        %v1206 = vmul.f32 %v990, %v1198
        %v1207 = vmul.f32 %v991, %v1199
        %v1208 = vmul.f32 %v992, %v1200
        %v1209 = vmul.f32 %v993, %v1201
        %v1210 = vmul.f32 %v994, %v1202
        %v1211 = vpack.c.bf16 %v1205, %v1203
        %v1212 = vpack.c.bf16 %v1206, %v1204
        %v1213 = vpack.c.bf16 %v1209, %v1207
        %v1214 = vpack.c.bf16 %v1210, %v1208
        %v1215 = vld [vmem:[%s5] sm:$0xf]
        %v1216 = vld [vmem:[%s5 + $0x4] sm:$0xf]
        %v1217 = vld [vmem:[%s5 + $0x8] sm:$0xf]
        %v1218 = vld [vmem:[%s5 + $0xc] sm:$0xf]
        %v1219 = vld [vmem:[%s5 + $0x10] sm:$0xf]
        %v1220 = vld [vmem:[%s5 + $0x14] sm:$0xf]
        %v1221 = vld [vmem:[%s5 + $0x18] sm:$0xf]
        %v1222 = vld [vmem:[%s5 + $0x1c] sm:$0xf]
        %v1223 = vld [vmem:[%s5 + $0x20] sm:$0xf]
        %v1224 = vld [vmem:[%s5 + $0x24] sm:$0xf]
        %v1225 = vld [vmem:[%s5 + $0x28] sm:$0xf]
        %v1226 = vld [vmem:[%s5 + $0x2c] sm:$0xf]
        %v1227 = vld [vmem:[%s5 + $0x30] sm:$0xf]
        %v1228 = vld [vmem:[%s5 + $0x34] sm:$0xf]
        %v1229 = vld [vmem:[%s5 + $0x38] sm:$0xf]
        %v1230 = vld [vmem:[%s5 + $0x3c] sm:$0xf]
        %v1231 = vld [vmem:[%s5 + $0x40] sm:$0xf]
        %v1232 = vld [vmem:[%s5 + $0x44] sm:$0xf]
        %v1233 = vld [vmem:[%s5 + $0x48] sm:$0xf]
        %v1234 = vld [vmem:[%s5 + $0x4c] sm:$0xf]
        %v1235 = vld [vmem:[%s5 + $0x50] sm:$0xf]
        %v1236 = vld [vmem:[%s5 + $0x54] sm:$0xf]
        %v1237 = vld [vmem:[%s5 + $0x58] sm:$0xf]
        %v1238 = vld [vmem:[%s5 + $0x5c] sm:$0xf]
        %v1239 = vld [vmem:[%s5 + $0x60] sm:$0xf]
        %v1240 = vld [vmem:[%s5 + $0x64] sm:$0xf]
        %v1241 = vld [vmem:[%s5 + $0x68] sm:$0xf]
        %v1242 = vld [vmem:[%s5 + $0x6c] sm:$0xf]
        %v1243 = vld [vmem:[%s5 + $0x70] sm:$0xf]
        %v1244 = vld [vmem:[%s5 + $0x74] sm:$0xf]
        %v1245 = vld [vmem:[%s5 + $0x78] sm:$0xf]
        %v1246 = vld [vmem:[%s5 + $0x7c] sm:$0xf]
        %v1247 = vld [vmem:[%s6] sm:$0x1]
        %v1249 = vlaneseq
        %v1250 = vshrl.u32 %v1249, 7
        %v1251 = vsub.s32 0, %v1250
        %v1252 = vrot.slane %v1247, %v1251
        %v1286 = vunpack.c.l.b16 %v1215
        %v1287 = vunpack.c.l.b16 %v1216
        %v1288 = vunpack.c.l.b16 %v1217
        %v1289 = vunpack.c.l.b16 %v1218
        %v1290 = vunpack.c.l.b16 %v1219
        %v1291 = vunpack.c.l.b16 %v1220
        %v1292 = vunpack.c.l.b16 %v1221
        %v1293 = vunpack.c.l.b16 %v1222
        %v1294 = vunpack.c.l.b16 %v1223
        %v1295 = vunpack.c.l.b16 %v1224
        %v1296 = vunpack.c.l.b16 %v1225
        %v1297 = vunpack.c.l.b16 %v1226
        %v1298 = vunpack.c.l.b16 %v1227
        %v1299 = vunpack.c.l.b16 %v1228
        %v1300 = vunpack.c.l.b16 %v1229
        %v1301 = vunpack.c.l.b16 %v1230
        %v1302 = vunpack.c.l.b16 %v1231
        %v1303 = vunpack.c.l.b16 %v1232
        %v1304 = vunpack.c.l.b16 %v1233
        %v1305 = vunpack.c.l.b16 %v1234
        %v1306 = vunpack.c.l.b16 %v1235
        %v1307 = vunpack.c.l.b16 %v1236
        %v1308 = vunpack.c.l.b16 %v1237
        %v1309 = vunpack.c.l.b16 %v1238
        %v1310 = vunpack.c.l.b16 %v1239
        %v1311 = vunpack.c.l.b16 %v1240
        %v1312 = vunpack.c.l.b16 %v1241
        %v1313 = vunpack.c.l.b16 %v1242
        %v1314 = vunpack.c.l.b16 %v1243
        %v1315 = vunpack.c.l.b16 %v1244
        %v1316 = vunpack.c.l.b16 %v1245
        %v1317 = vunpack.c.l.b16 %v1246
        %v1318 = vpack.c.b16 %v1287, %v1286
        %v1319 = vpack.c.b16 %v1289, %v1288
        %v1320 = vpack.c.b16 %v1291, %v1290
        %v1321 = vpack.c.b16 %v1293, %v1292
        %v1322 = vpack.c.b16 %v1295, %v1294
        %v1323 = vpack.c.b16 %v1297, %v1296
        %v1324 = vpack.c.b16 %v1299, %v1298
        %v1325 = vpack.c.b16 %v1301, %v1300
        %v1326 = vpack.c.b16 %v1303, %v1302
        %v1327 = vpack.c.b16 %v1305, %v1304
        %v1328 = vpack.c.b16 %v1307, %v1306
        %v1329 = vpack.c.b16 %v1309, %v1308
        %v1330 = vpack.c.b16 %v1311, %v1310
        %v1331 = vpack.c.b16 %v1313, %v1312
        %v1332 = vpack.c.b16 %v1315, %v1314
        %v1333 = vpack.c.b16 %v1317, %v1316
        %1350 = vmatprep.subr.bf16.mxu0 0
        %1351 = vmatpush1.bf16.msra.mxu0 %v1318
        %1352 = vmatprep.subr.bf16.mxu0 0
        %1353 = vmatpush1.bf16.msra.mxu0 %v1319
        %1354 = vmatprep.subr.bf16.mxu0 0
        %1355 = vmatpush1.bf16.msra.mxu0 %v1320
        %1356 = vmatprep.subr.bf16.mxu0 0
        %1357 = vmatpush1.bf16.msra.mxu0 %v1321
        %1358 = vmatprep.subr.bf16.mxu0 0
        %1359 = vmatpush1.bf16.msra.mxu0 %v1322
        %1360 = vmatprep.subr.bf16.mxu0 0
        %1361 = vmatpush1.bf16.msra.mxu0 %v1323
        %1362 = vmatprep.subr.bf16.mxu0 0
        %1363 = vmatpush1.bf16.msra.mxu0 %v1324
        %1364 = vmatprep.subr.bf16.mxu0 0
        %1365 = vmatpush1.bf16.msra.mxu0 %v1325
        %1366 = vmatprep.subr.bf16.mxu0 0
        %1367 = vmatpush1.bf16.msra.mxu0 %v1326
        %1368 = vmatprep.subr.bf16.mxu0 0
        %1369 = vmatpush1.bf16.msra.mxu0 %v1327
        %1370 = vmatprep.subr.bf16.mxu0 0
        %1371 = vmatpush1.bf16.msra.mxu0 %v1328
        %1372 = vmatprep.subr.bf16.mxu0 0
        %1373 = vmatpush1.bf16.msra.mxu0 %v1329
        %1374 = vmatprep.subr.bf16.mxu0 0
        %1375 = vmatpush1.bf16.msra.mxu0 %v1330
        %1376 = vmatprep.subr.bf16.mxu0 0
        %1377 = vmatpush1.bf16.msra.mxu0 %v1331
        %1378 = vmatprep.subr.bf16.mxu0 0
        %1379 = vmatpush1.bf16.msra.mxu0 %v1332
        %1380 = vmatprep.subr.bf16.mxu0 0
        %1381 = vmatpush1.bf16.msra.mxu0 %v1333
        %1382 = vmatprep.mubr.bf16.mxu0 %v1212
        %1383 = vmatmul.mubr.bf16.gmra.mrb[0].mxu0 %v1211
        %v1384 = vpop.f32.mrb[0].mxu0
        %v1385 = vadd.f32 %v1252, %v1384
        %v1386 = vpop.f32.mrb[0].mxu0
        %v1387 = vpop.f32.mrb[0].mxu0
        %v1388 = vadd.f32 %v1252, %v1387
        %v1389 = vpop.f32.mrb[0].mxu0
        %1390 = vmatprep.mubr.bf16.mxu0 %v1214
        %1391 = vmatmul.mubr.bf16.gmra.mrb[0].mxu0 %v1213
        %v1392 = vpop.f32.mrb[0].mxu0
        %v1393 = vadd.f32 %v1252, %v1392
        %v1394 = vpop.f32.mrb[0].mxu0
        %v1395 = vpop.f32.mrb[0].mxu0
        %v1396 = vadd.f32 %v1252, %v1395
        %v1397 = vpop.f32.mrb[0].mxu0
        %1398 = vdwg.mxu0
        %1399 = vst [vmem:[%s295] sm:$0xff] %v1385
        %1400 = vst [vmem:[%s295 + $0x8] sm:$0xff] %v1388
        %1401 = vst [vmem:[%s295 + $0x10] sm:$0xff] %v1393
        %1402 = vst [vmem:[%s295 + $0x18] sm:$0xff] %v1396
        %s1403 = sand.u32 %s197, 1
        %s1404 = scalar_lea.sflag [#allocation4], %s1403
        %s1405 = sand.u32 %s197, 1
        %s1406 = smul.addr %s1405, 32
        %s1407 = scalar_lea.vmem [#allocation3], %s1406
        // Predicated region
        $region57: #{mlp_forward.1} parent=47 // pred_check
          %p1408 = pneg %p207
        $region58: #{mlp_forward.1} parent=47 // pred_check_branch
          %1410 = sbr.rel (%p1408) target = $region60
        $region59: #{mlp_forward.1} parent=47 // pred_region
          %s1411 = smul.u32 4, %s26
          %s1413 = ssub.s32 512, 512
          %1414 = vsyncadd %s1404, %s1413
          %s1415 = smul.addr %s25, 8
          %s1416 = sadd.s32 %s1411, %s1415
          %s1417 = smul.addr %s1416, 128
          %s1418 = scalar_lea.hbm %s7, %s1417
          %s1419 = sshll.u32 %s1407, 4
          %s1420 = int_to_ptr.vmem [resolvable:$true] %s1419
          %1425 = dma.vmem_to_hbm [thread:$0]  %s1420, 512, %s1418, %s1404, 128, 128, 8
        $region60: #{mlp_forward.1} parent=47 // pred_fallthru
          _
      $region48: #{mlp_forward.1} parent=5 // pred_fallthru
        _
      %p1426 = scmp.le.s32.totalorder 2, %s16
      // Predicated region
      $region61: #{mlp_forward.1} parent=5 // pred_check
        %p1427 = pneg %p1426
      $region62: #{mlp_forward.1} parent=5 // pred_check_branch
        %1429 = sbr.rel (%p1427) target = $region64
      $region63: #{mlp_forward.1} parent=5 // pred_region
        %s1430 = ssub.s32 %s16, 2
        // Predicated region
        $region65: #{mlp_forward.1} parent=63 // pred_check
          %p1431 = pneg %p213
        $region66: #{mlp_forward.1} parent=63 // pred_check_branch
          %1433 = sbr.rel (%p1431) target = $region68
        $region67: #{mlp_forward.1} parent=63 // pred_region
          %s1434 = sand.u32 %s198, 1
          %s1435 = scalar_lea.sflag [#allocation4], %s1434
          %s1436 = sand.u32 %s198, 1
          %s1437 = smul.addr %s1436, 32
          %s1438 = scalar_lea.vmem [#allocation3], %s1437
          %1439 = dma.done %s1435, 512
        $region68: #{mlp_forward.1} parent=63 // pred_fallthru
          _
      $region64: #{mlp_forward.1} parent=5 // pred_fallthru
        _
    $region6: #{mlp_forward.1} parent=1 // loop_footer
      %s20 = sadd.s32 1, %s16
    $region7: #{mlp_forward.1} parent=1 // loop_footer_branch
      %15 = sbr.rel target = $region3
    $region8: #{mlp_forward.1} parent=1 // loop_exit
      _
    %1440 = vsyncpa [#allocation4], 1
    %s1441 = scalar_lea.sflag [#allocation4], 1
    %1442 = vsyncpa %s1441, 1

</llo_original>
